<compile_context>
chip_gen: v7x
topology: tpu7x:2x2x1
jax: 0.10.0
libtpu: 0.0.40
codegen_flags: <defaults>
</compile_context>

<pallas_src>
import functools
import math

import jax
import jax.numpy as jnp
from jax import lax
from jax.experimental import pallas as pl
from jax.experimental.pallas import tpu as pltpu

_INV_SQRT2 = 0.7071067811865476


def _gelu_exact(h):
    # exact (erf-based) GELU, matching torch.nn.GELU() default
    return 0.5 * h * (1.0 + lax.erf(h * jnp.float32(_INV_SQRT2)))


# ----------------------------- fused kernel ----------------------------------


def _mixer_block_kernel(x_ref,
                        cg_ref, cb_ref, cw1_ref, cb1_ref, cw2_ref, cb2_ref,
                        tg_ref, tb_ref, tw1t_ref, tb1_ref, tw2t_ref, tb2_ref,
                        o_ref, *, eps):
    """Fused channel mixer + token mixer (+ both residuals) on a [Bb, T, D] block."""
    bb, t, d = x_ref.shape
    xf = x_ref[...].astype(jnp.float32)                       # [Bb, T, D], f32 math
    mm_dtype = cw1_ref.dtype                                  # matmul operand dtype

    def ln(v, g_ref, b_ref):
        m = jnp.mean(v, axis=-1, keepdims=True)
        c = v - m
        var = jnp.mean(c * c, axis=-1, keepdims=True)
        return (c * lax.rsqrt(var + eps) * g_ref[...].astype(jnp.float32)
                + b_ref[...].astype(jnp.float32))

    # ---- channel mixer: LayerNorm(D) -> Linear(D->Cc) -> GELU -> Linear(Cc->D) ----
    x2 = xf.reshape(bb * t, d)                                # row-wise -> flatten rows
    xn = ln(x2, cg_ref, cb_ref)                               # [Rows, D]
    h = jnp.dot(xn.astype(mm_dtype), cw1_ref[...],
                preferred_element_type=jnp.float32)           # [Rows, Cc]
    h = _gelu_exact(h + cb1_ref[...].astype(jnp.float32))
    y = jnp.dot(h.astype(mm_dtype), cw2_ref[...],
                preferred_element_type=jnp.float32)           # [Rows, D]
    x1 = (x2 + y + cb2_ref[...].astype(jnp.float32)).reshape(bb, t, d)   # residual

    # ---- token mixer: LayerNorm(D) -> (transpose folded) MLP over Time -> residual ----
    xn = ln(x1, tg_ref, tb_ref)                               # [Bb, T, D]
    # h[b,c,d] = sum_t W1[t,c] * xn[b,t,d]   (W1 pre-transposed to [Ct, T])
    h = jnp.einsum('ct,btd->bcd', tw1t_ref[...], xn.astype(mm_dtype),
                   preferred_element_type=jnp.float32)        # [Bb, Ct, D]
    h = _gelu_exact(h + tb1_ref[...].astype(jnp.float32))     # tb1: [Ct, 1]
    # y[b,t,d] = sum_c W2[c,t] * h[b,c,d]    (W2 pre-transposed to [T, Ct])
    y = jnp.einsum('tc,bcd->btd', tw2t_ref[...], h.astype(mm_dtype),
                   preferred_element_type=jnp.float32)        # [Bb, T, D]
    y = y + tb2_ref[...].astype(jnp.float32)                  # tb2: [T, 1]
    o_ref[...] = (x1 + y).astype(o_ref.dtype)


# ----------------------------- wrapper ----------------------------------------


def _pick_block_b(batch, time, target_rows=512, min_grid=2):
    """Largest divisor of `batch` with Bb*T <= target_rows, preferring grid >= min_grid."""
    divisors = [v for v in range(1, batch + 1) if batch % v == 0]
    cands = [v for v in divisors if v * time <= target_rows] or [1]
    good = [v for v in cands if batch // v >= min_grid]
    return max(good) if good else max(cands)


def _mixer_block_pallas(x, p, *, eps, block_b):
    b, t, d = x.shape
    ch, tk = p["channel"], p["token"]
    cc = ch["w1"].shape[1]
    ct = tk["w1t"].shape[0]

    def const_spec(shape):
        return pl.BlockSpec(shape, lambda i, _n=len(shape): (0,) * _n)

    return pl.pallas_call(
        functools.partial(_mixer_block_kernel, eps=eps),
        out_shape=jax.ShapeDtypeStruct((b, t, d), x.dtype),
        grid_spec=pltpu.PrefetchScalarGridSpec(
            num_scalar_prefetch=0,
            grid=(b // block_b,),
            in_specs=[
                pl.BlockSpec((block_b, t, d), lambda i: (i, 0, 0)),   # x
                const_spec((1, d)), const_spec((1, d)),               # channel LN gamma/beta
                const_spec((d, cc)), const_spec((1, cc)),             # channel W1, b1
                const_spec((cc, d)), const_spec((1, d)),              # channel W2, b2
                const_spec((1, d)), const_spec((1, d)),               # token LN gamma/beta
                const_spec((ct, t)), const_spec((ct, 1)),             # token W1^T, b1
                const_spec((t, ct)), const_spec((t, 1)),              # token W2^T, b2
            ],
            out_specs=pl.BlockSpec((block_b, t, d), lambda i: (i, 0, 0)),
        ),
        compiler_params=pltpu.CompilerParams(
            dimension_semantics=("parallel",),
            vmem_limit_bytes=64 * 1024 * 1024,
        ),
    )(x,
      ch["gamma"], ch["beta"], ch["w1"], ch["b1"], ch["w2"], ch["b2"],
      tk["gamma"], tk["beta"], tk["w1t"], tk["b1"], tk["w2t"], tk["b2"])


def prepare_mixer_params(params, matmul_dtype=jnp.bfloat16):
    """One-time parameter prep: transpose token weights, reshape biases, cast weights."""
    ch, tk = params["channel"], params["token"]
    d, cc = ch["w1"].shape
    t, ct = tk["w1"].shape
    return {
        "channel": {
            "gamma": ch["gamma"].reshape(1, d).astype(jnp.float32),
            "beta": ch["beta"].reshape(1, d).astype(jnp.float32),
            "w1": ch["w1"].astype(matmul_dtype),
            "b1": ch["b1"].reshape(1, cc).astype(jnp.float32),
            "w2": ch["w2"].astype(matmul_dtype),
            "b2": ch["b2"].reshape(1, d).astype(jnp.float32),
        },
        "token": {
            "gamma": tk["gamma"].reshape(1, d).astype(jnp.float32),
            "beta": tk["beta"].reshape(1, d).astype(jnp.float32),
            "w1t": tk["w1"].T.astype(matmul_dtype),        # [Ct, T]
            "b1": tk["b1"].reshape(ct, 1).astype(jnp.float32),
            "w2t": tk["w2"].T.astype(matmul_dtype),        # [T, Ct]
            "b2": tk["b2"].reshape(t, 1).astype(jnp.float32),
        },
    }


@functools.partial(jax.jit, static_argnames=("eps", "target_rows"))
def mixer_block_forward(x, prepared_params, eps=1e-5, target_rows=512):
    """x: [Batch, Time, Dim] -> [Batch, Time, Dim] (channel mix + res, token mix + res)."""
    b, t, _ = x.shape
    block_b = _pick_block_b(b, t, target_rows=target_rows)
    return _mixer_block_pallas(x, prepared_params, eps=eps, block_b=block_b)


# ----------------------------- reference & setup ------------------------------


def mixer_block_reference(x, params, *, eps=1e-5):
    xf = x.astype(jnp.float32)

    def ln(v, g, bb):
        m = jnp.mean(v, axis=-1, keepdims=True)
        var = jnp.mean((v - m) ** 2, axis=-1, keepdims=True)
        return (v - m) * lax.rsqrt(var + eps) * g + bb

    ch = params["channel"]
    xn = ln(xf, ch["gamma"], ch["beta"])
    h = _gelu_exact(xn @ ch["w1"] + ch["b1"])
    x1 = xf + (h @ ch["w2"] + ch["b2"])

    tk = params["token"]
    xn = ln(x1, tk["gamma"], tk["beta"])
    xt = jnp.transpose(xn, (0, 2, 1))                    # [B, D, T]
    h = _gelu_exact(xt @ tk["w1"] + tk["b1"])            # [B, D, Ct]
    y = h @ tk["w2"] + tk["b2"]                          # [B, D, T]
    x2 = x1 + jnp.transpose(y, (0, 2, 1))
    return x2.astype(x.dtype)


def init_mixer_params(key, in_features, calc_features, ln_features):
    k1, k2 = jax.random.split(key)
    # Xavier-uniform-ish deterministic init (stand-in for Linear(w_init_gain=...))
    lim1 = math.sqrt(6.0 / (in_features + calc_features)) * math.sqrt(2.0)  # relu gain
    lim2 = math.sqrt(6.0 / (in_features + calc_features))                   # linear gain
    return {
        "gamma": jnp.ones((ln_features,), jnp.float32),
        "beta": jnp.zeros((ln_features,), jnp.float32),
        "w1": jax.random.uniform(k1, (in_features, calc_features), jnp.float32, -lim1, lim1),
        "b1": jnp.zeros((calc_features,), jnp.float32),
        "w2": jax.random.uniform(k2, (calc_features, in_features), jnp.float32, -lim2, lim2),
        "b2": jnp.zeros((in_features,), jnp.float32),
    }


if __name__ == "__main__":
    key = jax.random.PRNGKey(0)
    kx, kc, kt = jax.random.split(key, 3)

    B, T, D = 2, 8, 32            # Batch, Time (in_steps), Dim (in_features)
    CALC_FEATURES = 64            # channel-mixer hidden
    CALC_STEPS = 16               # token-mixer hidden

    x = jax.random.normal(kx, (B, T, D), jnp.float32)
    params = {
        "channel": init_mixer_params(kc, in_features=D, calc_features=CALC_FEATURES,
                                     ln_features=D),
        "token": init_mixer_params(kt, in_features=T, calc_features=CALC_STEPS,
                                   ln_features=D),
    }

    ref = mixer_block_reference(x, params)

    # f32-operand path: tight check against the pure-JAX reference.
    p_f32 = prepare_mixer_params(params, matmul_dtype=jnp.float32)
    y_f32 = mixer_block_forward(x, p_f32)
    jax.block_until_ready(y_f32)
    assert y_f32.shape == (B, T, D)
    err = float(jnp.max(jnp.abs(y_f32 - ref)))
    assert jnp.allclose(y_f32, ref, atol=1e-3, rtol=1e-3), err

    # bf16-operand path (performance default): f32 accumulation, looser tolerance.
    p_bf16 = prepare_mixer_params(params, matmul_dtype=jnp.bfloat16)
    y_bf16 = mixer_block_forward(x, p_bf16)
    jax.block_until_ready(y_bf16)
    err_bf16 = float(jnp.max(jnp.abs(y_bf16.astype(jnp.float32) - ref)))
    assert jnp.allclose(y_bf16.astype(jnp.float32), ref, atol=2e-1, rtol=1e-1), err_bf16

    print("KERNEL_OK")
</pallas_src>

<mosaic_0001>
module attributes {stable_mosaic.version = 11 : i64} {
  func.func @_mixer_block_kernel(%arg0: i32, %arg1: memref<1x8x32xf32, #tpu.memory_space<vmem>>, %arg2: memref<1x32xf32, #tpu.memory_space<vmem>>, %arg3: memref<1x32xf32, #tpu.memory_space<vmem>>, %arg4: memref<32x64xf32, #tpu.memory_space<vmem>>, %arg5: memref<1x64xf32, #tpu.memory_space<vmem>>, %arg6: memref<64x32xf32, #tpu.memory_space<vmem>>, %arg7: memref<1x32xf32, #tpu.memory_space<vmem>>, %arg8: memref<1x32xf32, #tpu.memory_space<vmem>>, %arg9: memref<1x32xf32, #tpu.memory_space<vmem>>, %arg10: memref<16x8xf32, #tpu.memory_space<vmem>>, %arg11: memref<16x1xf32, #tpu.memory_space<vmem>>, %arg12: memref<8x16xf32, #tpu.memory_space<vmem>>, %arg13: memref<8x1xf32, #tpu.memory_space<vmem>>, %arg14: memref<1x8x32xf32, #tpu.memory_space<vmem>>) attributes {dimension_semantics = [#tpu.dimension_semantics<parallel>], iteration_bounds = array<i64: 2>, scalar_prefetch = 0 : i64, scratch_operands = 0 : i64, tpu.core_type = #tpu.core_type<tc>, window_params = [{transform_indices = @transform_0, window_bounds = array<i64: 1, 8, 32>}, {pipeline_mode = #tpu.pipeline_mode<synchronous>, transform_indices = @transform_1, window_bounds = array<i64: 1, 32>}, {pipeline_mode = #tpu.pipeline_mode<synchronous>, transform_indices = @transform_2, window_bounds = array<i64: 1, 32>}, {pipeline_mode = #tpu.pipeline_mode<synchronous>, transform_indices = @transform_3, window_bounds = array<i64: 32, 64>}, {pipeline_mode = #tpu.pipeline_mode<synchronous>, transform_indices = @transform_4, window_bounds = array<i64: 1, 64>}, {pipeline_mode = #tpu.pipeline_mode<synchronous>, transform_indices = @transform_5, window_bounds = array<i64: 64, 32>}, {pipeline_mode = #tpu.pipeline_mode<synchronous>, transform_indices = @transform_6, window_bounds = array<i64: 1, 32>}, {pipeline_mode = #tpu.pipeline_mode<synchronous>, transform_indices = @transform_7, window_bounds = array<i64: 1, 32>}, {pipeline_mode = #tpu.pipeline_mode<synchronous>, transform_indices = @transform_8, window_bounds = array<i64: 1, 32>}, {pipeline_mode = #tpu.pipeline_mode<synchronous>, transform_indices = @transform_9, window_bounds = array<i64: 16, 8>}, {pipeline_mode = #tpu.pipeline_mode<synchronous>, transform_indices = @transform_10, window_bounds = array<i64: 16, 1>}, {pipeline_mode = #tpu.pipeline_mode<synchronous>, transform_indices = @transform_11, window_bounds = array<i64: 8, 16>}, {pipeline_mode = #tpu.pipeline_mode<synchronous>, transform_indices = @transform_12, window_bounds = array<i64: 8, 1>}, {transform_indices = @transform_13, window_bounds = array<i64: 1, 8, 32>}]} {
    %c0 = arith.constant 0 : index
    %c0_0 = arith.constant 0 : index
    %c0_1 = arith.constant 0 : index
    %0 = vector.load %arg1[%c0, %c0_0, %c0_1] : memref<1x8x32xf32, #tpu.memory_space<vmem>>, vector<1x8x32xf32>
    %1 = vector.shape_cast %0 : vector<1x8x32xf32> to vector<8x32xf32>
    %cst = arith.constant dense<0.000000e+00> : vector<8xf32>
    %2 = vector.multi_reduction <add>, %1, %cst [1] : vector<8x32xf32> to vector<8xf32>
    %3 = vector.shape_cast %2 : vector<8xf32> to vector<8x1xf32>
    %cst_2 = arith.constant 3.200000e+01 : f32
    %4 = vector.broadcast %cst_2 : f32 to vector<8x1xf32>
    %5 = arith.divf %3, %4 : vector<8x1xf32>
    %6 = vector.broadcast %5 : vector<8x1xf32> to vector<8x32xf32>
    %7 = arith.subf %1, %6 : vector<8x32xf32>
    %8 = arith.mulf %7, %7 : vector<8x32xf32>
    %cst_3 = arith.constant dense<0.000000e+00> : vector<8xf32>
    %9 = vector.multi_reduction <add>, %8, %cst_3 [1] : vector<8x32xf32> to vector<8xf32>
    %10 = vector.shape_cast %9 : vector<8xf32> to vector<8x1xf32>
    %cst_4 = arith.constant 3.200000e+01 : f32
    %11 = vector.broadcast %cst_4 : f32 to vector<8x1xf32>
    %12 = arith.divf %10, %11 : vector<8x1xf32>
    %cst_5 = arith.constant 9.99999974E-6 : f32
    %13 = vector.broadcast %cst_5 : f32 to vector<8x1xf32>
    %14 = arith.addf %12, %13 : vector<8x1xf32>
    %15 = math.rsqrt %14 : vector<8x1xf32>
    %16 = vector.broadcast %15 : vector<8x1xf32> to vector<8x32xf32>
    %17 = arith.mulf %7, %16 : vector<8x32xf32>
    %c0_6 = arith.constant 0 : index
    %c0_7 = arith.constant 0 : index
    %18 = vector.load %arg2[%c0_6, %c0_7] : memref<1x32xf32, #tpu.memory_space<vmem>>, vector<1x32xf32>
    %19 = vector.broadcast %18 : vector<1x32xf32> to vector<8x32xf32>
    %20 = arith.mulf %17, %19 : vector<8x32xf32>
    %c0_8 = arith.constant 0 : index
    %c0_9 = arith.constant 0 : index
    %21 = vector.load %arg3[%c0_8, %c0_9] : memref<1x32xf32, #tpu.memory_space<vmem>>, vector<1x32xf32>
    %22 = vector.broadcast %21 : vector<1x32xf32> to vector<8x32xf32>
    %23 = arith.addf %20, %22 : vector<8x32xf32>
    %c0_10 = arith.constant 0 : index
    %c0_11 = arith.constant 0 : index
    %24 = vector.load %arg4[%c0_10, %c0_11] : memref<32x64xf32, #tpu.memory_space<vmem>>, vector<32x64xf32>
    %cst_12 = arith.constant dense<0.000000e+00> : vector<8x64xf32>
    %25 = tpu.matmul %23, %24, %cst_12 {dimension_numbers = #tpu.dot_dimension_numbers<[1], [0], [0], [1], [0, 0, 1, 1], [], []>} : vector<8x32xf32>, vector<32x64xf32>, vector<8x64xf32> -> vector<8x64xf32>
    %c0_13 = arith.constant 0 : index
    %c0_14 = arith.constant 0 : index
    %26 = vector.load %arg5[%c0_13, %c0_14] : memref<1x64xf32, #tpu.memory_space<vmem>>, vector<1x64xf32>
    %27 = vector.broadcast %26 : vector<1x64xf32> to vector<8x64xf32>
    %28 = arith.addf %25, %27 : vector<8x64xf32>
    %cst_15 = arith.constant 5.000000e-01 : f32
    %29 = vector.broadcast %cst_15 : f32 to vector<8x64xf32>
    %30 = arith.mulf %29, %28 : vector<8x64xf32>
    %cst_16 = arith.constant 0.707106769 : f32
    %31 = vector.broadcast %cst_16 : f32 to vector<8x64xf32>
    %32 = arith.mulf %28, %31 : vector<8x64xf32>
    %33 = math.erf %32 : vector<8x64xf32>
    %cst_17 = arith.constant 1.000000e+00 : f32
    %34 = vector.broadcast %cst_17 : f32 to vector<8x64xf32>
    %35 = arith.addf %34, %33 : vector<8x64xf32>
    %36 = arith.mulf %30, %35 : vector<8x64xf32>
    %c0_18 = arith.constant 0 : index
    %c0_19 = arith.constant 0 : index
    %37 = vector.load %arg6[%c0_18, %c0_19] : memref<64x32xf32, #tpu.memory_space<vmem>>, vector<64x32xf32>
    %cst_20 = arith.constant dense<0.000000e+00> : vector<8x32xf32>
    %38 = tpu.matmul %36, %37, %cst_20 {dimension_numbers = #tpu.dot_dimension_numbers<[1], [0], [0], [1], [0, 0, 1, 1], [], []>} : vector<8x64xf32>, vector<64x32xf32>, vector<8x32xf32> -> vector<8x32xf32>
    %39 = arith.addf %1, %38 : vector<8x32xf32>
    %c0_21 = arith.constant 0 : index
    %c0_22 = arith.constant 0 : index
    %40 = vector.load %arg7[%c0_21, %c0_22] : memref<1x32xf32, #tpu.memory_space<vmem>>, vector<1x32xf32>
    %41 = vector.broadcast %40 : vector<1x32xf32> to vector<8x32xf32>
    %42 = arith.addf %39, %41 : vector<8x32xf32>
    %43 = vector.shape_cast %42 : vector<8x32xf32> to vector<1x8x32xf32>
    %cst_23 = arith.constant dense<0.000000e+00> : vector<1x8xf32>
    %44 = vector.multi_reduction <add>, %43, %cst_23 [2] : vector<1x8x32xf32> to vector<1x8xf32>
    %45 = vector.shape_cast %44 : vector<1x8xf32> to vector<1x8x1xf32>
    %cst_24 = arith.constant 3.200000e+01 : f32
    %46 = vector.broadcast %cst_24 : f32 to vector<1x8x1xf32>
    %47 = arith.divf %45, %46 : vector<1x8x1xf32>
    %48 = vector.broadcast %47 : vector<1x8x1xf32> to vector<1x8x32xf32>
    %49 = arith.subf %43, %48 : vector<1x8x32xf32>
    %50 = arith.mulf %49, %49 : vector<1x8x32xf32>
    %cst_25 = arith.constant dense<0.000000e+00> : vector<1x8xf32>
    %51 = vector.multi_reduction <add>, %50, %cst_25 [2] : vector<1x8x32xf32> to vector<1x8xf32>
    %52 = vector.shape_cast %51 : vector<1x8xf32> to vector<1x8x1xf32>
    %cst_26 = arith.constant 3.200000e+01 : f32
    %53 = vector.broadcast %cst_26 : f32 to vector<1x8x1xf32>
    %54 = arith.divf %52, %53 : vector<1x8x1xf32>
    %cst_27 = arith.constant 9.99999974E-6 : f32
    %55 = vector.broadcast %cst_27 : f32 to vector<1x8x1xf32>
    %56 = arith.addf %54, %55 : vector<1x8x1xf32>
    %57 = math.rsqrt %56 : vector<1x8x1xf32>
    %58 = vector.broadcast %57 : vector<1x8x1xf32> to vector<1x8x32xf32>
    %59 = arith.mulf %49, %58 : vector<1x8x32xf32>
    %c0_28 = arith.constant 0 : index
    %c0_29 = arith.constant 0 : index
    %60 = vector.load %arg8[%c0_28, %c0_29] : memref<1x32xf32, #tpu.memory_space<vmem>>, vector<1x32xf32>
    %61 = vector.shape_cast %60 : vector<1x32xf32> to vector<1x1x32xf32>
    %62 = vector.broadcast %61 : vector<1x1x32xf32> to vector<1x8x32xf32>
    %63 = arith.mulf %59, %62 : vector<1x8x32xf32>
    %c0_30 = arith.constant 0 : index
    %c0_31 = arith.constant 0 : index
    %64 = vector.load %arg9[%c0_30, %c0_31] : memref<1x32xf32, #tpu.memory_space<vmem>>, vector<1x32xf32>
    %65 = vector.shape_cast %64 : vector<1x32xf32> to vector<1x1x32xf32>
    %66 = vector.broadcast %65 : vector<1x1x32xf32> to vector<1x8x32xf32>
    %67 = arith.addf %63, %66 : vector<1x8x32xf32>
    %c0_32 = arith.constant 0 : index
    %c0_33 = arith.constant 0 : index
    %68 = vector.load %arg10[%c0_32, %c0_33] : memref<16x8xf32, #tpu.memory_space<vmem>>, vector<16x8xf32>
    "tpu.trace_start"() <{level = 10 : i32, message = "ct,btd->bcd"}> : () -> ()
    %cst_34 = arith.constant dense<0.000000e+00> : vector<1x32x16xf32>
    %69 = tpu.matmul %67, %68, %cst_34 {dimension_numbers = #tpu.dot_dimension_numbers<[1], [1], [0, 2], [0], [0, 0, 0, 2, 1, 0], [], []>} : vector<1x8x32xf32>, vector<16x8xf32>, vector<1x32x16xf32> -> vector<1x32x16xf32>
    %70 = tpu.transpose %69, [0, 2, 1] : vector<1x32x16xf32> -> vector<1x16x32xf32>
    "tpu.trace_stop"() : () -> ()
    %c0_35 = arith.constant 0 : index
    %c0_36 = arith.constant 0 : index
    %71 = vector.load %arg11[%c0_35, %c0_36] : memref<16x1xf32, #tpu.memory_space<vmem>>, vector<16x1xf32>
    %72 = vector.shape_cast %71 : vector<16x1xf32> to vector<1x16x1xf32>
    %73 = vector.broadcast %72 : vector<1x16x1xf32> to vector<1x16x32xf32>
    %74 = arith.addf %70, %73 : vector<1x16x32xf32>
    %cst_37 = arith.constant 5.000000e-01 : f32
    %75 = vector.broadcast %cst_37 : f32 to vector<1x16x32xf32>
    %76 = arith.mulf %75, %74 : vector<1x16x32xf32>
    %cst_38 = arith.constant 0.707106769 : f32
    %77 = vector.broadcast %cst_38 : f32 to vector<1x16x32xf32>
    %78 = arith.mulf %74, %77 : vector<1x16x32xf32>
    %79 = math.erf %78 : vector<1x16x32xf32>
    %cst_39 = arith.constant 1.000000e+00 : f32
    %80 = vector.broadcast %cst_39 : f32 to vector<1x16x32xf32>
    %81 = arith.addf %80, %79 : vector<1x16x32xf32>
    %82 = arith.mulf %76, %81 : vector<1x16x32xf32>
    %c0_40 = arith.constant 0 : index
    %c0_41 = arith.constant 0 : index
    %83 = vector.load %arg12[%c0_40, %c0_41] : memref<8x16xf32, #tpu.memory_space<vmem>>, vector<8x16xf32>
    "tpu.trace_start"() <{level = 10 : i32, message = "tc,bcd->btd"}> : () -> ()
    %cst_42 = arith.constant dense<0.000000e+00> : vector<1x32x8xf32>
    %84 = tpu.matmul %82, %83, %cst_42 {dimension_numbers = #tpu.dot_dimension_numbers<[1], [1], [0, 2], [0], [0, 0, 0, 2, 1, 0], [], []>} : vector<1x16x32xf32>, vector<8x16xf32>, vector<1x32x8xf32> -> vector<1x32x8xf32>
    %85 = tpu.transpose %84, [0, 2, 1] : vector<1x32x8xf32> -> vector<1x8x32xf32>
    "tpu.trace_stop"() : () -> ()
    %c0_43 = arith.constant 0 : index
    %c0_44 = arith.constant 0 : index
    %86 = vector.load %arg13[%c0_43, %c0_44] : memref<8x1xf32, #tpu.memory_space<vmem>>, vector<8x1xf32>
    %87 = vector.shape_cast %86 : vector<8x1xf32> to vector<1x8x1xf32>
    %88 = vector.broadcast %87 : vector<1x8x1xf32> to vector<1x8x32xf32>
    %89 = arith.addf %85, %88 : vector<1x8x32xf32>
    %90 = arith.addf %43, %89 : vector<1x8x32xf32>
    %c0_45 = arith.constant 0 : index
    %c0_46 = arith.constant 0 : index
    %c0_47 = arith.constant 0 : index
    %91 = vector.load %arg14[%c0_45, %c0_46, %c0_47] : memref<1x8x32xf32, #tpu.memory_space<vmem>>, vector<1x8x32xf32>
    tpu.vector_store %arg14[%c0_45, %c0_46, %c0_47], %90 {strides = array<i32>} : memref<1x8x32xf32, #tpu.memory_space<vmem>>, vector<1x8x32xf32>,
    return
  }
  func.func @transform_0(%arg0: i32) -> (i32, i32, i32) {
    %c0_i32 = arith.constant 0 : i32
    %c0_i32_0 = arith.constant 0 : i32
    %c0_i32_1 = arith.constant 0 : i32
    return %arg0, %c0_i32, %c0_i32_0 : i32, i32, i32
  }
  func.func @transform_1(%arg0: i32) -> (i32, i32) {
    %c0_i32 = arith.constant 0 : i32
    %c0_i32_0 = arith.constant 0 : i32
    %c0_i32_1 = arith.constant 0 : i32
    return %c0_i32, %c0_i32_0 : i32, i32
  }
  func.func @transform_2(%arg0: i32) -> (i32, i32) {
    %c0_i32 = arith.constant 0 : i32
    %c0_i32_0 = arith.constant 0 : i32
    %c0_i32_1 = arith.constant 0 : i32
    return %c0_i32, %c0_i32_0 : i32, i32
  }
  func.func @transform_3(%arg0: i32) -> (i32, i32) {
    %c0_i32 = arith.constant 0 : i32
    %c0_i32_0 = arith.constant 0 : i32
    %c0_i32_1 = arith.constant 0 : i32
    return %c0_i32, %c0_i32_0 : i32, i32
  }
  func.func @transform_4(%arg0: i32) -> (i32, i32) {
    %c0_i32 = arith.constant 0 : i32
    %c0_i32_0 = arith.constant 0 : i32
    %c0_i32_1 = arith.constant 0 : i32
    return %c0_i32, %c0_i32_0 : i32, i32
  }
  func.func @transform_5(%arg0: i32) -> (i32, i32) {
    %c0_i32 = arith.constant 0 : i32
    %c0_i32_0 = arith.constant 0 : i32
    %c0_i32_1 = arith.constant 0 : i32
    return %c0_i32, %c0_i32_0 : i32, i32
  }
  func.func @transform_6(%arg0: i32) -> (i32, i32) {
    %c0_i32 = arith.constant 0 : i32
    %c0_i32_0 = arith.constant 0 : i32
    %c0_i32_1 = arith.constant 0 : i32
    return %c0_i32, %c0_i32_0 : i32, i32
  }
  func.func @transform_7(%arg0: i32) -> (i32, i32) {
    %c0_i32 = arith.constant 0 : i32
    %c0_i32_0 = arith.constant 0 : i32
    %c0_i32_1 = arith.constant 0 : i32
    return %c0_i32, %c0_i32_0 : i32, i32
  }
  func.func @transform_8(%arg0: i32) -> (i32, i32) {
    %c0_i32 = arith.constant 0 : i32
    %c0_i32_0 = arith.constant 0 : i32
    %c0_i32_1 = arith.constant 0 : i32
    return %c0_i32, %c0_i32_0 : i32, i32
  }
  func.func @transform_9(%arg0: i32) -> (i32, i32) {
    %c0_i32 = arith.constant 0 : i32
    %c0_i32_0 = arith.constant 0 : i32
    %c0_i32_1 = arith.constant 0 : i32
    return %c0_i32, %c0_i32_0 : i32, i32
  }
  func.func @transform_10(%arg0: i32) -> (i32, i32) {
    %c0_i32 = arith.constant 0 : i32
    %c0_i32_0 = arith.constant 0 : i32
    %c0_i32_1 = arith.constant 0 : i32
    return %c0_i32, %c0_i32_0 : i32, i32
  }
  func.func @transform_11(%arg0: i32) -> (i32, i32) {
    %c0_i32 = arith.constant 0 : i32
    %c0_i32_0 = arith.constant 0 : i32
    %c0_i32_1 = arith.constant 0 : i32
    return %c0_i32, %c0_i32_0 : i32, i32
  }
  func.func @transform_12(%arg0: i32) -> (i32, i32) {
    %c0_i32 = arith.constant 0 : i32
    %c0_i32_0 = arith.constant 0 : i32
    %c0_i32_1 = arith.constant 0 : i32
    return %c0_i32, %c0_i32_0 : i32, i32
  }
  func.func @transform_13(%arg0: i32) -> (i32, i32, i32) {
    %c0_i32 = arith.constant 0 : i32
    %c0_i32_0 = arith.constant 0 : i32
    %c0_i32_1 = arith.constant 0 : i32
    return %arg0, %c0_i32, %c0_i32_0 : i32, i32, i32
  }
}

</mosaic_0001>

<llo_original>
// kernel: mixer_block_forward.1
$region0: #{mixer_block_forward.1}
  #allocation0 [shape = 'u32[]', space=smem, size = 0x4, offset = 0x4, fixed_abs, tag = 'smem constant byte address 0x4 - core index']
  #allocation1 [shape = 'u32[144,128]{1,0:T(1,128)}', space=vmem, size = 0x12000, scoped, tag = 'internal scratch']
  %s0 = inlined_call_operand.hbm [shape: f32[2,8,32], index: 0, kind: input, shape index: {}]
  %s1 = inlined_call_operand.hbm [shape: f32[1,32], index: 1, kind: input, shape index: {}]
  %s2 = inlined_call_operand.hbm [shape: f32[1,32], index: 2, kind: input, shape index: {}]
  %s3 = inlined_call_operand.hbm [shape: f32[32,64], index: 3, kind: input, shape index: {}]
  %s4 = inlined_call_operand.hbm [shape: f32[1,64], index: 4, kind: input, shape index: {}]
  %s5 = inlined_call_operand.hbm [shape: f32[64,32], index: 5, kind: input, shape index: {}]
  %s6 = inlined_call_operand.hbm [shape: f32[1,32], index: 6, kind: input, shape index: {}]
  %s7 = inlined_call_operand.hbm [shape: f32[1,32], index: 7, kind: input, shape index: {}]
  %s8 = inlined_call_operand.hbm [shape: f32[1,32], index: 8, kind: input, shape index: {}]
  %s9 = inlined_call_operand.hbm [shape: f32[16,8], index: 9, kind: input, shape index: {}]
  %s10 = inlined_call_operand.hbm [shape: f32[16,1], index: 10, kind: input, shape index: {}]
  %s11 = inlined_call_operand.hbm [shape: f32[8,16], index: 11, kind: input, shape index: {}]
  %s12 = inlined_call_operand.hbm [shape: f32[8,1], index: 12, kind: input, shape index: {}]
  %s13 = inlined_call_operand.hbm [shape: f32[2,8,32], index: 13, kind: output, shape index: {}]
  %s14 = sld [smem:[#allocation0]]
  $region137: #{mixer_block_forward.1} parent=0
    _
  %s16 = ssub.s32 1, %s14
  %s17 = scalar_select 0, %s16, %s14
  $region1: #{mixer_block_forward.1} parent=0
    #allocation2 [shape = 'u8[8192]{0}', space=vmem, size = 0x2000, scoped, tag = 'input window, operand 0']
    #allocation3 [shape = 's32[2]{0}', space=sflag, size = 0x8, scoped, tag = 'scoped memory for mixer_block_forward.1']
    #allocation4 [shape = 's32[2]{0}', space=sflag, size = 0x8, scoped, tag = 'scoped memory for mixer_block_forward.1']
    #allocation5 [shape = 'u8[512]{0}', space=vmem, size = 0x400, scoped, tag = 'input window, operand 1, single buffered']
    #allocation6 [shape = 's32[1]{0}', space=sflag, size = 0x4, scoped, tag = 'scoped memory for mixer_block_forward.1']
    #allocation7 [shape = 'u8[512]{0}', space=vmem, size = 0x400, scoped, tag = 'input window, operand 2, single buffered']
    #allocation8 [shape = 'u8[16384]{0}', space=vmem, size = 0x4000, scoped, tag = 'input window, operand 3, single buffered']
    #allocation9 [shape = 's32[1]{0}', space=sflag, size = 0x4, scoped, tag = 'scoped memory for mixer_block_forward.1']
    #allocation10 [shape = 'u8[512]{0}', space=vmem, size = 0x400, scoped, tag = 'input window, operand 4, single buffered']
    #allocation11 [shape = 'u8[32768]{0}', space=vmem, size = 0x8000, scoped, tag = 'input window, operand 5, single buffered']
    #allocation12 [shape = 's32[1]{0}', space=sflag, size = 0x4, scoped, tag = 'scoped memory for mixer_block_forward.1']
    #allocation13 [shape = 'u8[512]{0}', space=vmem, size = 0x400, scoped, tag = 'input window, operand 6, single buffered']
    #allocation14 [shape = 'u8[512]{0}', space=vmem, size = 0x400, scoped, tag = 'input window, operand 7, single buffered']
    #allocation15 [shape = 's32[1]{0}', space=sflag, size = 0x4, scoped, tag = 'scoped memory for mixer_block_forward.1']
    #allocation16 [shape = 'u8[512]{0}', space=vmem, size = 0x400, scoped, tag = 'input window, operand 8, single buffered']
    #allocation17 [shape = 'u8[8192]{0}', space=vmem, size = 0x2000, scoped, tag = 'input window, operand 9, single buffered']
    #allocation18 [shape = 's32[1]{0}', space=sflag, size = 0x4, scoped, tag = 'scoped memory for mixer_block_forward.1']
    #allocation19 [shape = 'u8[8192]{0}', space=vmem, size = 0x2000, scoped, tag = 'input window, operand 10, single buffered']
    #allocation20 [shape = 'u8[4096]{0}', space=vmem, size = 0x1000, scoped, tag = 'input window, operand 11, single buffered']
    #allocation21 [shape = 's32[1]{0}', space=sflag, size = 0x4, scoped, tag = 'scoped memory for mixer_block_forward.1']
    #allocation22 [shape = 'u8[4096]{0}', space=vmem, size = 0x1000, scoped, tag = 'input window, operand 12, single buffered']
    #allocation23 [shape = 'u8[8192]{0}', space=vmem, size = 0x2000, scoped, tag = 'output window, operand 0']
    %18 = vsyncpa [#allocation3], 0
    %s19 = scalar_lea.sflag [#allocation3], 1
    %20 = vsyncpa %s19, 0
    %21 = vsyncpa [#allocation6], 0
    %22 = vsyncpa [#allocation9], 0
    %23 = vsyncpa [#allocation12], 0
    %24 = vsyncpa [#allocation15], 0
    %25 = vsyncpa [#allocation18], 0
    %26 = vsyncpa [#allocation21], 0
    %27 = vsyncpa [#allocation4], 0
    %s28 = scalar_lea.sflag [#allocation4], 1
    %29 = vsyncpa %s28, 0
    loop: start=0, step=1, limit=4
    $region2: #{mixer_block_forward.1} parent=1 // loop_pre_header
      _
    $region3: #{mixer_block_forward.1} parent=1 // loop_header
      %s31 = sphi 0, %s35
      %p32 = scmp.ge.s32.totalorder %s31, 4
      %s41 = sphi 0, %s43
      %s44 = sphi 0, %s41
      %s45 = sphi 0, %s44
      %s61 = sphi 0, %s45
      %s65 = sphi 0, %s65
      %s67 = sphi 0, %s65
      %s68 = sphi 0, %s67
      %s82 = sphi 0, %s68
      %s86 = sphi 0, %s86
      %s88 = sphi 0, %s86
      %s89 = sphi 0, %s88
      %s103 = sphi 0, %s89
      %s107 = sphi 0, %s107
      %s109 = sphi 0, %s107
      %s110 = sphi 0, %s109
      %s124 = sphi 0, %s110
      %s128 = sphi 0, %s128
      %s130 = sphi 0, %s128
      %s131 = sphi 0, %s130
      %s145 = sphi 0, %s131
      %s149 = sphi 0, %s149
      %s151 = sphi 0, %s149
      %s152 = sphi 0, %s151
      %s166 = sphi 0, %s152
      %s170 = sphi 0, %s170
      %s172 = sphi 0, %s170
      %s173 = sphi 0, %s172
      %s187 = sphi 0, %s173
      %s191 = sphi 0, %s191
      %s193 = sphi 0, %s191
      %s194 = sphi 0, %s193
      %s208 = sphi 0, %s194
      %s212 = sphi 0, %s212
      %s214 = sphi 0, %s212
      %s215 = sphi 0, %s214
      %s229 = sphi 0, %s215
      %s233 = sphi 0, %s233
      %s235 = sphi 0, %s233
      %s236 = sphi 0, %s235
      %s250 = sphi 0, %s236
      %s254 = sphi 0, %s254
      %s256 = sphi 0, %s254
      %s257 = sphi 0, %s256
      %s271 = sphi 0, %s257
      %s275 = sphi 0, %s275
      %s277 = sphi 0, %s275
      %s278 = sphi 0, %s277
      %s292 = sphi 0, %s278
      %s296 = sphi 0, %s296
      %s298 = sphi 0, %s296
      %s299 = sphi 0, %s298
      %s313 = sphi 0, %s299
      %s319 = sphi 0, %s321
      %s322 = sphi 0, %s319
      %s323 = sphi 0, %s322
      %s339 = sphi 0, %s323
    $region4: #{mixer_block_forward.1} parent=1 // loop_header_branch
      %34 = sbr.rel (%p32) target = $region8
    $region5: #{mixer_block_forward.1} parent=1 // loop_body
      %s36 = ssub.s32 %s31, 1
      %s37 = ssub.s32 %s31, 2
      %s38 = sadd.s32 %s31, 1
      %s39 = ssub.s32 %s31, %s38
      %p40 = scmp.eq.s32.totalorder %s39, 0
      %s42 = sadd.s32 %s41, 1
      %s43 = scalar_select %p40, %s41, %s42
      %p46 = pneg %p40
      %p47 = scmp.eq.s32.totalorder %s31, 1
      %p48 = por %p46, %p47
      %p49 = scmp.ne.s32.totalorder %s41, %s44
      %p50 = scmp.eq.s32.totalorder %s31, 0
      %p51 = por %p49, %p50
      %p52 = scmp.ne.s32.totalorder %s41, %s44
      %p53 = scmp.eq.s32.totalorder %s36, 1
      %p54 = por %p52, %p53
      %p55 = scmp.ne.s32.totalorder %s44, %s45
      %p56 = scmp.eq.s32.totalorder %s36, 0
      %p57 = por %p55, %p56
      %p58 = scmp.ne.s32.totalorder %s44, %s45
      %p59 = scmp.eq.s32.totalorder %s37, 1
      %p60 = por %p58, %p59
      %p62 = scmp.ne.s32.totalorder %s45, %s61
      %p63 = scmp.eq.s32.totalorder %s37, 0
      %p64 = por %p62, %p63
      %s66 = sadd.s32 %s65, 1
      %p69 = scmp.eq.s32.totalorder %s31, 1
      %p70 = scmp.ne.s32.totalorder %s65, %s67
      %p71 = scmp.eq.s32.totalorder %s31, 0
      %p72 = por %p70, %p71
      %p73 = scmp.ne.s32.totalorder %s65, %s67
      %p74 = scmp.eq.s32.totalorder %s36, 1
      %p75 = por %p73, %p74
      %p76 = scmp.ne.s32.totalorder %s67, %s68
      %p77 = scmp.eq.s32.totalorder %s36, 0
      %p78 = por %p76, %p77
      %p79 = scmp.ne.s32.totalorder %s67, %s68
      %p80 = scmp.eq.s32.totalorder %s37, 1
      %p81 = por %p79, %p80
      %p83 = scmp.ne.s32.totalorder %s68, %s82
      %p84 = scmp.eq.s32.totalorder %s37, 0
      %p85 = por %p83, %p84
      %s87 = sadd.s32 %s86, 1
      %p90 = scmp.eq.s32.totalorder %s31, 1
      %p91 = scmp.ne.s32.totalorder %s86, %s88
      %p92 = scmp.eq.s32.totalorder %s31, 0
      %p93 = por %p91, %p92
      %p94 = scmp.ne.s32.totalorder %s86, %s88
      %p95 = scmp.eq.s32.totalorder %s36, 1
      %p96 = por %p94, %p95
      %p97 = scmp.ne.s32.totalorder %s88, %s89
      %p98 = scmp.eq.s32.totalorder %s36, 0
      %p99 = por %p97, %p98
      %p100 = scmp.ne.s32.totalorder %s88, %s89
      %p101 = scmp.eq.s32.totalorder %s37, 1
      %p102 = por %p100, %p101
      %p104 = scmp.ne.s32.totalorder %s89, %s103
      %p105 = scmp.eq.s32.totalorder %s37, 0
      %p106 = por %p104, %p105
      %s108 = sadd.s32 %s107, 1
      %p111 = scmp.eq.s32.totalorder %s31, 1
      %p112 = scmp.ne.s32.totalorder %s107, %s109
      %p113 = scmp.eq.s32.totalorder %s31, 0
      %p114 = por %p112, %p113
      %p115 = scmp.ne.s32.totalorder %s107, %s109
      %p116 = scmp.eq.s32.totalorder %s36, 1
      %p117 = por %p115, %p116
      %p118 = scmp.ne.s32.totalorder %s109, %s110
      %p119 = scmp.eq.s32.totalorder %s36, 0
      %p120 = por %p118, %p119
      %p121 = scmp.ne.s32.totalorder %s109, %s110
      %p122 = scmp.eq.s32.totalorder %s37, 1
      %p123 = por %p121, %p122
      %p125 = scmp.ne.s32.totalorder %s110, %s124
      %p126 = scmp.eq.s32.totalorder %s37, 0
      %p127 = por %p125, %p126
      %s129 = sadd.s32 %s128, 1
      %p132 = scmp.eq.s32.totalorder %s31, 1
      %p133 = scmp.ne.s32.totalorder %s128, %s130
      %p134 = scmp.eq.s32.totalorder %s31, 0
      %p135 = por %p133, %p134
      %p136 = scmp.ne.s32.totalorder %s128, %s130
      %p137 = scmp.eq.s32.totalorder %s36, 1
      %p138 = por %p136, %p137
      %p139 = scmp.ne.s32.totalorder %s130, %s131
      %p140 = scmp.eq.s32.totalorder %s36, 0
      %p141 = por %p139, %p140
      %p142 = scmp.ne.s32.totalorder %s130, %s131
      %p143 = scmp.eq.s32.totalorder %s37, 1
      %p144 = por %p142, %p143
      %p146 = scmp.ne.s32.totalorder %s131, %s145
      %p147 = scmp.eq.s32.totalorder %s37, 0
      %p148 = por %p146, %p147
      %s150 = sadd.s32 %s149, 1
      %p153 = scmp.eq.s32.totalorder %s31, 1
      %p154 = scmp.ne.s32.totalorder %s149, %s151
      %p155 = scmp.eq.s32.totalorder %s31, 0
      %p156 = por %p154, %p155
      %p157 = scmp.ne.s32.totalorder %s149, %s151
      %p158 = scmp.eq.s32.totalorder %s36, 1
      %p159 = por %p157, %p158
      %p160 = scmp.ne.s32.totalorder %s151, %s152
      %p161 = scmp.eq.s32.totalorder %s36, 0
      %p162 = por %p160, %p161
      %p163 = scmp.ne.s32.totalorder %s151, %s152
      %p164 = scmp.eq.s32.totalorder %s37, 1
      %p165 = por %p163, %p164
      %p167 = scmp.ne.s32.totalorder %s152, %s166
      %p168 = scmp.eq.s32.totalorder %s37, 0
      %p169 = por %p167, %p168
      %s171 = sadd.s32 %s170, 1
      %p174 = scmp.eq.s32.totalorder %s31, 1
      %p175 = scmp.ne.s32.totalorder %s170, %s172
      %p176 = scmp.eq.s32.totalorder %s31, 0
      %p177 = por %p175, %p176
      %p178 = scmp.ne.s32.totalorder %s170, %s172
      %p179 = scmp.eq.s32.totalorder %s36, 1
      %p180 = por %p178, %p179
      %p181 = scmp.ne.s32.totalorder %s172, %s173
      %p182 = scmp.eq.s32.totalorder %s36, 0
      %p183 = por %p181, %p182
      %p184 = scmp.ne.s32.totalorder %s172, %s173
      %p185 = scmp.eq.s32.totalorder %s37, 1
      %p186 = por %p184, %p185
      %p188 = scmp.ne.s32.totalorder %s173, %s187
      %p189 = scmp.eq.s32.totalorder %s37, 0
      %p190 = por %p188, %p189
      %s192 = sadd.s32 %s191, 1
      %p195 = scmp.eq.s32.totalorder %s31, 1
      %p196 = scmp.ne.s32.totalorder %s191, %s193
      %p197 = scmp.eq.s32.totalorder %s31, 0
      %p198 = por %p196, %p197
      %p199 = scmp.ne.s32.totalorder %s191, %s193
      %p200 = scmp.eq.s32.totalorder %s36, 1
      %p201 = por %p199, %p200
      %p202 = scmp.ne.s32.totalorder %s193, %s194
      %p203 = scmp.eq.s32.totalorder %s36, 0
      %p204 = por %p202, %p203
      %p205 = scmp.ne.s32.totalorder %s193, %s194
      %p206 = scmp.eq.s32.totalorder %s37, 1
      %p207 = por %p205, %p206
      %p209 = scmp.ne.s32.totalorder %s194, %s208
      %p210 = scmp.eq.s32.totalorder %s37, 0
      %p211 = por %p209, %p210
      %s213 = sadd.s32 %s212, 1
      %p216 = scmp.eq.s32.totalorder %s31, 1
      %p217 = scmp.ne.s32.totalorder %s212, %s214
      %p218 = scmp.eq.s32.totalorder %s31, 0
      %p219 = por %p217, %p218
      %p220 = scmp.ne.s32.totalorder %s212, %s214
      %p221 = scmp.eq.s32.totalorder %s36, 1
      %p222 = por %p220, %p221
      %p223 = scmp.ne.s32.totalorder %s214, %s215
      %p224 = scmp.eq.s32.totalorder %s36, 0
      %p225 = por %p223, %p224
      %p226 = scmp.ne.s32.totalorder %s214, %s215
      %p227 = scmp.eq.s32.totalorder %s37, 1
      %p228 = por %p226, %p227
      %p230 = scmp.ne.s32.totalorder %s215, %s229
      %p231 = scmp.eq.s32.totalorder %s37, 0
      %p232 = por %p230, %p231
      %s234 = sadd.s32 %s233, 1
      %p237 = scmp.eq.s32.totalorder %s31, 1
      %p238 = scmp.ne.s32.totalorder %s233, %s235
      %p239 = scmp.eq.s32.totalorder %s31, 0
      %p240 = por %p238, %p239
      %p241 = scmp.ne.s32.totalorder %s233, %s235
      %p242 = scmp.eq.s32.totalorder %s36, 1
      %p243 = por %p241, %p242
      %p244 = scmp.ne.s32.totalorder %s235, %s236
      %p245 = scmp.eq.s32.totalorder %s36, 0
      %p246 = por %p244, %p245
      %p247 = scmp.ne.s32.totalorder %s235, %s236
      %p248 = scmp.eq.s32.totalorder %s37, 1
      %p249 = por %p247, %p248
      %p251 = scmp.ne.s32.totalorder %s236, %s250
      %p252 = scmp.eq.s32.totalorder %s37, 0
      %p253 = por %p251, %p252
      %s255 = sadd.s32 %s254, 1
      %p258 = scmp.eq.s32.totalorder %s31, 1
      %p259 = scmp.ne.s32.totalorder %s254, %s256
      %p260 = scmp.eq.s32.totalorder %s31, 0
      %p261 = por %p259, %p260
      %p262 = scmp.ne.s32.totalorder %s254, %s256
      %p263 = scmp.eq.s32.totalorder %s36, 1
      %p264 = por %p262, %p263
      %p265 = scmp.ne.s32.totalorder %s256, %s257
      %p266 = scmp.eq.s32.totalorder %s36, 0
      %p267 = por %p265, %p266
      %p268 = scmp.ne.s32.totalorder %s256, %s257
      %p269 = scmp.eq.s32.totalorder %s37, 1
      %p270 = por %p268, %p269
      %p272 = scmp.ne.s32.totalorder %s257, %s271
      %p273 = scmp.eq.s32.totalorder %s37, 0
      %p274 = por %p272, %p273
      %s276 = sadd.s32 %s275, 1
      %p279 = scmp.eq.s32.totalorder %s31, 1
      %p280 = scmp.ne.s32.totalorder %s275, %s277
      %p281 = scmp.eq.s32.totalorder %s31, 0
      %p282 = por %p280, %p281
      %p283 = scmp.ne.s32.totalorder %s275, %s277
      %p284 = scmp.eq.s32.totalorder %s36, 1
      %p285 = por %p283, %p284
      %p286 = scmp.ne.s32.totalorder %s277, %s278
      %p287 = scmp.eq.s32.totalorder %s36, 0
      %p288 = por %p286, %p287
      %p289 = scmp.ne.s32.totalorder %s277, %s278
      %p290 = scmp.eq.s32.totalorder %s37, 1
      %p291 = por %p289, %p290
      %p293 = scmp.ne.s32.totalorder %s278, %s292
      %p294 = scmp.eq.s32.totalorder %s37, 0
      %p295 = por %p293, %p294
      %s297 = sadd.s32 %s296, 1
      %p300 = scmp.eq.s32.totalorder %s31, 1
      %p301 = scmp.ne.s32.totalorder %s296, %s298
      %p302 = scmp.eq.s32.totalorder %s31, 0
      %p303 = por %p301, %p302
      %p304 = scmp.ne.s32.totalorder %s296, %s298
      %p305 = scmp.eq.s32.totalorder %s36, 1
      %p306 = por %p304, %p305
      %p307 = scmp.ne.s32.totalorder %s298, %s299
      %p308 = scmp.eq.s32.totalorder %s36, 0
      %p309 = por %p307, %p308
      %p310 = scmp.ne.s32.totalorder %s298, %s299
      %p311 = scmp.eq.s32.totalorder %s37, 1
      %p312 = por %p310, %p311
      %p314 = scmp.ne.s32.totalorder %s299, %s313
      %p315 = scmp.eq.s32.totalorder %s37, 0
      %p316 = por %p314, %p315
      %s317 = ssub.s32 %s31, %s38
      %p318 = scmp.eq.s32.totalorder %s317, 0
      %s320 = sadd.s32 %s319, 1
      %s321 = scalar_select %p318, %s319, %s320
      %p324 = pneg %p318
      %p325 = scmp.eq.s32.totalorder %s31, 1
      %p326 = por %p324, %p325
      %p327 = scmp.ne.s32.totalorder %s319, %s322
      %p328 = scmp.eq.s32.totalorder %s31, 0
      %p329 = por %p327, %p328
      %p330 = scmp.ne.s32.totalorder %s319, %s322
      %p331 = scmp.eq.s32.totalorder %s36, 1
      %p332 = por %p330, %p331
      %p333 = scmp.ne.s32.totalorder %s322, %s323
      %p334 = scmp.eq.s32.totalorder %s36, 0
      %p335 = por %p333, %p334
      %p336 = scmp.ne.s32.totalorder %s322, %s323
      %p337 = scmp.eq.s32.totalorder %s37, 1
      %p338 = por %p336, %p337
      %p340 = scmp.ne.s32.totalorder %s323, %s339
      %p341 = scmp.eq.s32.totalorder %s37, 0
      %p342 = por %p340, %p341
      %p343 = scmp.le.s32.totalorder 1, %s31
      %p344 = scmp.lt.s32.totalorder %s31, 3
      %p345 = pnand %p343, %p344
      %p346 = pneg %p345
      // Predicated region
      $region9: #{mixer_block_forward.1} parent=5 // pred_check
        _
      $region10: #{mixer_block_forward.1} parent=5 // pred_check_branch
        %348 = sbr.rel (%p345) target = $region12
      $region11: #{mixer_block_forward.1} parent=5 // pred_region
        %s349 = ssub.s32 %s31, 1
        // Predicated region
        $region13: #{mixer_block_forward.1} parent=11 // pred_check
          %p350 = pneg %p78
        $region14: #{mixer_block_forward.1} parent=11 // pred_check_branch
          %352 = sbr.rel (%p350) target = $region16
        $region15: #{mixer_block_forward.1} parent=11 // pred_region
          %s354 = ssub.s32 16, 16
          %355 = vsyncadd [#allocation6], %s354
          %s357 = sshll.u32 [#allocation5], 4
          %s358 = int_to_ptr.vmem [resolvable:$true] %s357
          %360 = dma.hbm_to_vmem [thread:$0]  %s1, 16, %s358, [#allocation6]
        $region16: #{mixer_block_forward.1} parent=11 // pred_fallthru
          _
        // Predicated region
        $region17: #{mixer_block_forward.1} parent=11 // pred_check
          %p361 = pneg %p99
        $region18: #{mixer_block_forward.1} parent=11 // pred_check_branch
          %363 = sbr.rel (%p361) target = $region20
        $region19: #{mixer_block_forward.1} parent=11 // pred_region
          %s365 = ssub.s32 16, 16
          %366 = vsyncadd [#allocation6], %s365
          %s368 = sshll.u32 [#allocation7], 4
          %s369 = int_to_ptr.vmem [resolvable:$true] %s368
          %371 = dma.hbm_to_vmem [thread:$0]  %s2, 16, %s369, [#allocation6]
        $region20: #{mixer_block_forward.1} parent=11 // pred_fallthru
          _
        // Predicated region
        $region21: #{mixer_block_forward.1} parent=11 // pred_check
          %p372 = pneg %p120
        $region22: #{mixer_block_forward.1} parent=11 // pred_check_branch
          %374 = sbr.rel (%p372) target = $region24
        $region23: #{mixer_block_forward.1} parent=11 // pred_region
          %s376 = ssub.s32 512, 512
          %377 = vsyncadd [#allocation9], %s376
          %s378 = sshll.u32 [#allocation8], 4
          %s379 = int_to_ptr.vmem [resolvable:$true] %s378
          %384 = dma.hbm_to_vmem [thread:$0]  %s3, 512, %s379, [#allocation9], 128, 128, 8
        $region24: #{mixer_block_forward.1} parent=11 // pred_fallthru
          _
        // Predicated region
        $region25: #{mixer_block_forward.1} parent=11 // pred_check
          %p385 = pneg %p141
        $region26: #{mixer_block_forward.1} parent=11 // pred_check_branch
          %387 = sbr.rel (%p385) target = $region28
        $region27: #{mixer_block_forward.1} parent=11 // pred_region
          %s389 = ssub.s32 16, 16
          %390 = vsyncadd [#allocation9], %s389
          %s392 = sshll.u32 [#allocation10], 4
          %s393 = int_to_ptr.vmem [resolvable:$true] %s392
          %395 = dma.hbm_to_vmem [thread:$0]  %s4, 16, %s393, [#allocation9]
        $region28: #{mixer_block_forward.1} parent=11 // pred_fallthru
          _
        // Predicated region
        $region29: #{mixer_block_forward.1} parent=11 // pred_check
          %p396 = pneg %p162
        $region30: #{mixer_block_forward.1} parent=11 // pred_check_branch
          %398 = sbr.rel (%p396) target = $region32
        $region31: #{mixer_block_forward.1} parent=11 // pred_region
          %s400 = ssub.s32 1024, 1024
          %401 = vsyncadd [#allocation12], %s400
          %s402 = sshll.u32 [#allocation11], 4
          %s403 = int_to_ptr.vmem [resolvable:$true] %s402
          %408 = dma.hbm_to_vmem [thread:$0]  %s5, 1024, %s403, [#allocation12], 128, 128, 8
        $region32: #{mixer_block_forward.1} parent=11 // pred_fallthru
          _
        // Predicated region
        $region33: #{mixer_block_forward.1} parent=11 // pred_check
          %p409 = pneg %p183
        $region34: #{mixer_block_forward.1} parent=11 // pred_check_branch
          %411 = sbr.rel (%p409) target = $region36
        $region35: #{mixer_block_forward.1} parent=11 // pred_region
          %s413 = ssub.s32 16, 16
          %414 = vsyncadd [#allocation12], %s413
          %s416 = sshll.u32 [#allocation13], 4
          %s417 = int_to_ptr.vmem [resolvable:$true] %s416
          %419 = dma.hbm_to_vmem [thread:$0]  %s6, 16, %s417, [#allocation12]
        $region36: #{mixer_block_forward.1} parent=11 // pred_fallthru
          _
        // Predicated region
        $region37: #{mixer_block_forward.1} parent=11 // pred_check
          %p420 = pneg %p204
        $region38: #{mixer_block_forward.1} parent=11 // pred_check_branch
          %422 = sbr.rel (%p420) target = $region40
        $region39: #{mixer_block_forward.1} parent=11 // pred_region
          %s424 = ssub.s32 16, 16
          %425 = vsyncadd [#allocation15], %s424
          %s427 = sshll.u32 [#allocation14], 4
          %s428 = int_to_ptr.vmem [resolvable:$true] %s427
          %430 = dma.hbm_to_vmem [thread:$0]  %s7, 16, %s428, [#allocation15]
        $region40: #{mixer_block_forward.1} parent=11 // pred_fallthru
          _
        // Predicated region
        $region41: #{mixer_block_forward.1} parent=11 // pred_check
          %p431 = pneg %p225
        $region42: #{mixer_block_forward.1} parent=11 // pred_check_branch
          %433 = sbr.rel (%p431) target = $region44
        $region43: #{mixer_block_forward.1} parent=11 // pred_region
          %s435 = ssub.s32 16, 16
          %436 = vsyncadd [#allocation15], %s435
          %s438 = sshll.u32 [#allocation16], 4
          %s439 = int_to_ptr.vmem [resolvable:$true] %s438
          %441 = dma.hbm_to_vmem [thread:$0]  %s8, 16, %s439, [#allocation15]
        $region44: #{mixer_block_forward.1} parent=11 // pred_fallthru
          _
        // Predicated region
        $region45: #{mixer_block_forward.1} parent=11 // pred_check
          %p442 = pneg %p246
        $region46: #{mixer_block_forward.1} parent=11 // pred_check_branch
          %444 = sbr.rel (%p442) target = $region48
        $region47: #{mixer_block_forward.1} parent=11 // pred_region
          %s446 = ssub.s32 256, 256
          %447 = vsyncadd [#allocation18], %s446
          %s448 = sshll.u32 [#allocation17], 4
          %s449 = int_to_ptr.vmem [resolvable:$true] %s448
          %454 = dma.hbm_to_vmem [thread:$0]  %s9, 256, %s449, [#allocation18], 128, 128, 8
        $region48: #{mixer_block_forward.1} parent=11 // pred_fallthru
          _
        // Predicated region
        $region49: #{mixer_block_forward.1} parent=11 // pred_check
          %p455 = pneg %p267
        $region50: #{mixer_block_forward.1} parent=11 // pred_check_branch
          %457 = sbr.rel (%p455) target = $region52
        $region51: #{mixer_block_forward.1} parent=11 // pred_region
          %s459 = ssub.s32 256, 256
          %460 = vsyncadd [#allocation18], %s459
          %s461 = sshll.u32 [#allocation19], 4
          %s462 = int_to_ptr.vmem [resolvable:$true] %s461
          %467 = dma.hbm_to_vmem [thread:$0]  %s10, 256, %s462, [#allocation18], 128, 128, 8
        $region52: #{mixer_block_forward.1} parent=11 // pred_fallthru
          _
        // Predicated region
        $region53: #{mixer_block_forward.1} parent=11 // pred_check
          %p468 = pneg %p288
        $region54: #{mixer_block_forward.1} parent=11 // pred_check_branch
          %470 = sbr.rel (%p468) target = $region56
        $region55: #{mixer_block_forward.1} parent=11 // pred_region
          %s472 = ssub.s32 128, 128
          %473 = vsyncadd [#allocation21], %s472
          %s475 = sshll.u32 [#allocation20], 4
          %s476 = int_to_ptr.vmem [resolvable:$true] %s475
          %478 = dma.hbm_to_vmem [thread:$0]  %s11, 128, %s476, [#allocation21]
        $region56: #{mixer_block_forward.1} parent=11 // pred_fallthru
          _
        // Predicated region
        $region57: #{mixer_block_forward.1} parent=11 // pred_check
          %p479 = pneg %p309
        $region58: #{mixer_block_forward.1} parent=11 // pred_check_branch
          %481 = sbr.rel (%p479) target = $region60
        $region59: #{mixer_block_forward.1} parent=11 // pred_region
          %s483 = ssub.s32 128, 128
          %484 = vsyncadd [#allocation21], %s483
          %s486 = sshll.u32 [#allocation22], 4
          %s487 = int_to_ptr.vmem [resolvable:$true] %s486
          %489 = dma.hbm_to_vmem [thread:$0]  %s12, 128, %s487, [#allocation21]
        $region60: #{mixer_block_forward.1} parent=11 // pred_fallthru
          _
      $region12: #{mixer_block_forward.1} parent=5 // pred_fallthru
        _
      %p490 = scmp.lt.s32.totalorder %s31, 2
      // Predicated region
      $region61: #{mixer_block_forward.1} parent=5 // pred_check
        %p491 = pneg %p490
      $region62: #{mixer_block_forward.1} parent=5 // pred_check_branch
        %493 = sbr.rel (%p491) target = $region64
      $region63: #{mixer_block_forward.1} parent=5 // pred_region
        // Predicated region
        $region65: #{mixer_block_forward.1} parent=63 // pred_check
          %p494 = pneg %p51
        $region66: #{mixer_block_forward.1} parent=63 // pred_check_branch
          %496 = sbr.rel (%p494) target = $region68
        $region67: #{mixer_block_forward.1} parent=63 // pred_region
          %s497 = sand.u32 %s41, 1
          %s498 = scalar_lea.sflag [#allocation3], %s497
          %s499 = sand.u32 %s41, 1
          %s500 = smul.addr %s499, 8
          %s501 = scalar_lea.vmem [#allocation2], %s500
          %s503 = ssub.s32 128, 128
          %504 = vsyncadd %s498, %s503
          %s505 = smul.addr %s31, 128
          %s506 = scalar_lea.hbm %s0, %s505
          %s508 = sshll.u32 %s501, 4
          %s509 = int_to_ptr.vmem [resolvable:$true] %s508
          %511 = dma.hbm_to_vmem [thread:$0]  %s506, 128, %s509, %s498
        $region68: #{mixer_block_forward.1} parent=63 // pred_fallthru
          _
      $region64: #{mixer_block_forward.1} parent=5 // pred_fallthru
        _
      %p512 = scmp.le.s32.totalorder 1, %s31
      %p513 = scmp.lt.s32.totalorder %s31, 3
      %p514 = pnand %p512, %p513
      %p515 = pneg %p514
      // Predicated region
      $region69: #{mixer_block_forward.1} parent=5 // pred_check
        _
      $region70: #{mixer_block_forward.1} parent=5 // pred_check_branch
        %517 = sbr.rel (%p514) target = $region72
      $region71: #{mixer_block_forward.1} parent=5 // pred_region
        %s518 = ssub.s32 %s31, 1
        %s519 = sand.u32 %s44, 1
        %s520 = scalar_lea.sflag [#allocation3], %s519
        %s521 = sand.u32 %s44, 1
        %s522 = smul.addr %s521, 8
        %s523 = scalar_lea.vmem [#allocation2], %s522
        // Predicated region
        $region73: #{mixer_block_forward.1} parent=71 // pred_check
          %p524 = pneg %p57
        $region74: #{mixer_block_forward.1} parent=71 // pred_check_branch
          %526 = sbr.rel (%p524) target = $region76
        $region75: #{mixer_block_forward.1} parent=71 // pred_region
          %527 = dma.done %s520, 128
        $region76: #{mixer_block_forward.1} parent=71 // pred_fallthru
          _
        // Predicated region
        $region77: #{mixer_block_forward.1} parent=71 // pred_check
          %p528 = pneg %p78
        $region78: #{mixer_block_forward.1} parent=71 // pred_check_branch
          %530 = sbr.rel (%p528) target = $region80
        $region79: #{mixer_block_forward.1} parent=71 // pred_region
          %531 = dma.done [#allocation6], 16
        $region80: #{mixer_block_forward.1} parent=71 // pred_fallthru
          _
        // Predicated region
        $region81: #{mixer_block_forward.1} parent=71 // pred_check
          %p532 = pneg %p99
        $region82: #{mixer_block_forward.1} parent=71 // pred_check_branch
          %534 = sbr.rel (%p532) target = $region84
        $region83: #{mixer_block_forward.1} parent=71 // pred_region
          %535 = dma.done [#allocation6], 16
        $region84: #{mixer_block_forward.1} parent=71 // pred_fallthru
          _
        // Predicated region
        $region85: #{mixer_block_forward.1} parent=71 // pred_check
          %p536 = pneg %p120
        $region86: #{mixer_block_forward.1} parent=71 // pred_check_branch
          %538 = sbr.rel (%p536) target = $region88
        $region87: #{mixer_block_forward.1} parent=71 // pred_region
          %539 = dma.done [#allocation9], 512
        $region88: #{mixer_block_forward.1} parent=71 // pred_fallthru
          _
        // Predicated region
        $region89: #{mixer_block_forward.1} parent=71 // pred_check
          %p540 = pneg %p141
        $region90: #{mixer_block_forward.1} parent=71 // pred_check_branch
          %542 = sbr.rel (%p540) target = $region92
        $region91: #{mixer_block_forward.1} parent=71 // pred_region
          %543 = dma.done [#allocation9], 16
        $region92: #{mixer_block_forward.1} parent=71 // pred_fallthru
          _
        // Predicated region
        $region93: #{mixer_block_forward.1} parent=71 // pred_check
          %p544 = pneg %p162
        $region94: #{mixer_block_forward.1} parent=71 // pred_check_branch
          %546 = sbr.rel (%p544) target = $region96
        $region95: #{mixer_block_forward.1} parent=71 // pred_region
          %547 = dma.done [#allocation12], 1024
        $region96: #{mixer_block_forward.1} parent=71 // pred_fallthru
          _
        // Predicated region
        $region97: #{mixer_block_forward.1} parent=71 // pred_check
          %p548 = pneg %p183
        $region98: #{mixer_block_forward.1} parent=71 // pred_check_branch
          %550 = sbr.rel (%p548) target = $region100
        $region99: #{mixer_block_forward.1} parent=71 // pred_region
          %551 = dma.done [#allocation12], 16
        $region100: #{mixer_block_forward.1} parent=71 // pred_fallthru
          _
        // Predicated region
        $region101: #{mixer_block_forward.1} parent=71 // pred_check
          %p552 = pneg %p204
        $region102: #{mixer_block_forward.1} parent=71 // pred_check_branch
          %554 = sbr.rel (%p552) target = $region104
        $region103: #{mixer_block_forward.1} parent=71 // pred_region
          %555 = dma.done [#allocation15], 16
        $region104: #{mixer_block_forward.1} parent=71 // pred_fallthru
          _
        // Predicated region
        $region105: #{mixer_block_forward.1} parent=71 // pred_check
          %p556 = pneg %p225
        $region106: #{mixer_block_forward.1} parent=71 // pred_check_branch
          %558 = sbr.rel (%p556) target = $region108
        $region107: #{mixer_block_forward.1} parent=71 // pred_region
          %559 = dma.done [#allocation15], 16
        $region108: #{mixer_block_forward.1} parent=71 // pred_fallthru
          _
        // Predicated region
        $region109: #{mixer_block_forward.1} parent=71 // pred_check
          %p560 = pneg %p246
        $region110: #{mixer_block_forward.1} parent=71 // pred_check_branch
          %562 = sbr.rel (%p560) target = $region112
        $region111: #{mixer_block_forward.1} parent=71 // pred_region
          %563 = dma.done [#allocation18], 256
        $region112: #{mixer_block_forward.1} parent=71 // pred_fallthru
          _
        // Predicated region
        $region113: #{mixer_block_forward.1} parent=71 // pred_check
          %p564 = pneg %p267
        $region114: #{mixer_block_forward.1} parent=71 // pred_check_branch
          %566 = sbr.rel (%p564) target = $region116
        $region115: #{mixer_block_forward.1} parent=71 // pred_region
          %567 = dma.done [#allocation18], 256
        $region116: #{mixer_block_forward.1} parent=71 // pred_fallthru
          _
        // Predicated region
        $region117: #{mixer_block_forward.1} parent=71 // pred_check
          %p568 = pneg %p288
        $region118: #{mixer_block_forward.1} parent=71 // pred_check_branch
          %570 = sbr.rel (%p568) target = $region120
        $region119: #{mixer_block_forward.1} parent=71 // pred_region
          %571 = dma.done [#allocation21], 128
        $region120: #{mixer_block_forward.1} parent=71 // pred_fallthru
          _
        // Predicated region
        $region121: #{mixer_block_forward.1} parent=71 // pred_check
          %p572 = pneg %p309
        $region122: #{mixer_block_forward.1} parent=71 // pred_check_branch
          %574 = sbr.rel (%p572) target = $region124
        $region123: #{mixer_block_forward.1} parent=71 // pred_region
          %575 = dma.done [#allocation21], 128
        $region124: #{mixer_block_forward.1} parent=71 // pred_fallthru
          _
        %s576 = sand.u32 %s44, 1
        %s577 = scalar_lea.sflag [#allocation3], %s576
        %s578 = sand.u32 %s44, 1
        %s579 = smul.addr %s578, 8
        %s580 = scalar_lea.vmem [#allocation2], %s579
        %p581 = pneg %p57
        %p582 = pneg %p54
        %p583 = pneg %p78
        %p584 = pneg %p75
        %p585 = pneg %p99
        %p586 = pneg %p96
        %p587 = pneg %p120
        %p588 = pneg %p117
        %p589 = pneg %p141
        %p590 = pneg %p138
        %p591 = pneg %p162
        %p592 = pneg %p159
        %p593 = pneg %p183
        %p594 = pneg %p180
        %p595 = pneg %p204
        %p596 = pneg %p201
        %p597 = pneg %p225
        %p598 = pneg %p222
        %p599 = pneg %p246
        %p600 = pneg %p243
        %p601 = pneg %p267
        %p602 = pneg %p264
        %p603 = pneg %p288
        %p604 = pneg %p285
        %p605 = pneg %p309
        %p606 = pneg %p306
        %p607 = pneg %p335
        %p608 = pneg %p332
        %s609 = sand.u32 %s322, 1
        %s610 = scalar_lea.sflag [#allocation4], %s609
        %s611 = sand.u32 %s322, 1
        %s612 = smul.addr %s611, 8
        %s613 = scalar_lea.vmem [#allocation23], %s612
        %v614 = vld [vmem:[%s523] sm:$0xff]
        %vm615 = vcmask 261120
        %v616 = vsel %vm615, %v614, 0.0
        %617 = vadd.xlane.f32.xlu0 %v616
        %v618 = vpop.xlane.xlu0 %617
        %v619 = vrcp.pop 32.0
        %v620 = vmul.f32 %v618, %v619
        %v621 = vsub.f32 %v614, %v620
        %v622 = vmul.f32 %v621, %v621
        %v623 = vsel %vm615, %v622, 0.0
        %624 = vadd.xlane.f32.xlu0 %v623
        %v625 = vpop.xlane.xlu0 %624
        %v626 = vmul.f32 %v625, %v619
        %v627 = vadd.f32 %v626, 1e-05
        %v628 = vrsqrt.pop %v627
        %v629 = vmul.f32 %v621, %v628
        %v630 = vld [vmem:[#allocation5] sm:$0x1]
        %v632 = vlaneseq
        %v633 = vshrl.u32 %v632, 7
        %v634 = vsub.s32 0, %v633
        %v635 = vrot.slane %v630, %v634
        %v637 = vmul.f32 %v629, %v635
        %v638 = vld [vmem:[#allocation7] sm:$0x1]
        %v640 = vlaneseq
        %v641 = vshrl.u32 %v640, 7
        %v642 = vsub.s32 0, %v641
        %v643 = vrot.slane %v638, %v642
        %v645 = vadd.f32 %v637, %v643
        %v646 = vld [vmem:[#allocation8] sm:$0xff]
        %v647 = vld [vmem:[#allocation8 + $0x8] sm:$0xff]
        %v648 = vld [vmem:[#allocation8 + $0x10] sm:$0xff]
        %v649 = vld [vmem:[#allocation8 + $0x18] sm:$0xff]
        %v650 = vld [vmem:[#allocation10] sm:$0x1]
        %v652 = vlaneseq
        %v653 = vshrl.u32 %v652, 7
        %v654 = vsub.s32 0, %v653
        %v655 = vrot.slane %v650, %v654
        %v658 = vsel %vm615, %v645, 0
        %660 = vmatprep.subr.mxu0 0.0
        %661 = vmatpush1.msra.mxu0 %v646
        %662 = vmatprep.subr.mxu0 0.0
        %663 = vmatpush1.msra.mxu0 %v647
        %664 = vmatprep.subr.mxu0 0.0
        %665 = vmatpush1.msra.mxu0 %v648
        %666 = vmatprep.subr.mxu0 0.0
        %667 = vmatpush1.msra.mxu0 %v649
        %668 = vmatprep.subr.mxu0 0.0
        %669 = vmatpush1.msra.mxu0 0.0
        %670 = vmatprep.subr.mxu0 0.0
        %671 = vmatpush1.msra.mxu0 0.0
        %672 = vmatprep.subr.mxu0 0.0
        %673 = vmatpush1.msra.mxu0 0.0
        %674 = vmatprep.subr.mxu0 0.0
        %675 = vmatpush1.msra.mxu0 0.0
        %676 = vmatprep.subr.mxu0 0.0
        %677 = vmatpush1.msra.mxu0 0.0
        %678 = vmatprep.subr.mxu0 0.0
        %679 = vmatpush1.msra.mxu0 0.0
        %680 = vmatprep.subr.mxu0 0.0
        %681 = vmatpush1.msra.mxu0 0.0
        %682 = vmatprep.subr.mxu0 0.0
        %683 = vmatpush1.msra.mxu0 0.0
        %684 = vmatprep.subr.mxu0 0.0
        %685 = vmatpush1.msra.mxu0 0.0
        %686 = vmatprep.subr.mxu0 0.0
        %687 = vmatpush1.msra.mxu0 0.0
        %688 = vmatprep.subr.mxu0 0.0
        %689 = vmatpush1.msra.mxu0 0.0
        %690 = vmatprep.subr.mxu0 0.0
        %691 = vmatpush1.msra.mxu0 0.0
        %692 = vmatprep.subr.mxu0 0.0
        %693 = vmatpush1.msra.mxu0 0.0
        %694 = vmatprep.subr.mxu0 0.0
        %695 = vmatpush1.msra.mxu0 0.0
        %696 = vmatprep.subr.mxu0 0.0
        %697 = vmatpush1.msra.mxu0 0.0
        %698 = vmatprep.subr.mxu0 0.0
        %699 = vmatpush1.msra.mxu0 0.0
        %700 = vmatprep.subr.mxu0 0.0
        %701 = vmatpush1.msra.mxu0 0.0
        %702 = vmatprep.subr.mxu0 0.0
        %703 = vmatpush1.msra.mxu0 0.0
        %704 = vmatprep.subr.mxu0 0.0
        %705 = vmatpush1.msra.mxu0 0.0
        %706 = vmatprep.subr.mxu0 0.0
        %707 = vmatpush1.msra.mxu0 0.0
        %708 = vmatprep.subr.mxu0 0.0
        %709 = vmatpush1.msra.mxu0 0.0
        %710 = vmatprep.subr.mxu0 0.0
        %711 = vmatpush1.msra.mxu0 0.0
        %712 = vmatprep.subr.mxu0 0.0
        %713 = vmatpush1.msra.mxu0 0.0
        %714 = vmatprep.subr.mxu0 0.0
        %715 = vmatpush1.msra.mxu0 0.0
        %716 = vmatprep.subr.mxu0 0.0
        %717 = vmatpush1.msra.mxu0 0.0
        %718 = vmatprep.subr.mxu0 0.0
        %719 = vmatpush1.msra.mxu0 0.0
        %720 = vmatprep.subr.mxu0 0.0
        %721 = vmatpush1.msra.mxu0 0.0
        %722 = vmatprep.subr.mxu0 0.0
        %723 = vmatpush1.msra.mxu0 0.0
        %724 = vmatprep.mubr.f32.mxu0 0.0
        %725 = vmatmul.mubr.f32.gmra.mrb[0].mxu0 %v658
        %v726 = vpop.f32.mrb[0].mxu0
        %v727 = vadd.f32 %v655, %v726
        %v728 = vpop.f32.mrb[0].mxu0
        %729 = vdwg.mxu0
        %v730 = vmul.f32 %v727, 0.5
        %v731 = vmul.f32 %v727, 0.70710677
        %v732 = verf.f32.pop %v731
        %v733 = vadd.f32 %v732, 1.0
        %v734 = vmul.f32 %v730, %v733
        %v735 = vld [vmem:[#allocation11] sm:$0xff]
        %v736 = vld [vmem:[#allocation11 + $0x8] sm:$0xff]
        %v737 = vld [vmem:[#allocation11 + $0x10] sm:$0xff]
        %v738 = vld [vmem:[#allocation11 + $0x18] sm:$0xff]
        %v739 = vld [vmem:[#allocation11 + $0x20] sm:$0xff]
        %v740 = vld [vmem:[#allocation11 + $0x28] sm:$0xff]
        %v741 = vld [vmem:[#allocation11 + $0x30] sm:$0xff]
        %v742 = vld [vmem:[#allocation11 + $0x38] sm:$0xff]
        %vm743 = vcmask 523264
        %v745 = vsel %vm743, %v734, 0
        %747 = vmatprep.subr.mxu0 0.0
        %748 = vmatpush1.msra.mxu0 %v735
        %749 = vmatprep.subr.mxu0 0.0
        %750 = vmatpush1.msra.mxu0 %v736
        %751 = vmatprep.subr.mxu0 0.0
        %752 = vmatpush1.msra.mxu0 %v737
        %753 = vmatprep.subr.mxu0 0.0
        %754 = vmatpush1.msra.mxu0 %v738
        %755 = vmatprep.subr.mxu0 0.0
        %756 = vmatpush1.msra.mxu0 %v739
        %757 = vmatprep.subr.mxu0 0.0
        %758 = vmatpush1.msra.mxu0 %v740
        %759 = vmatprep.subr.mxu0 0.0
        %760 = vmatpush1.msra.mxu0 %v741
        %761 = vmatprep.subr.mxu0 0.0
        %762 = vmatpush1.msra.mxu0 %v742
        %763 = vmatprep.subr.mxu0 0.0
        %764 = vmatpush1.msra.mxu0 0.0
        %765 = vmatprep.subr.mxu0 0.0
        %766 = vmatpush1.msra.mxu0 0.0
        %767 = vmatprep.subr.mxu0 0.0
        %768 = vmatpush1.msra.mxu0 0.0
        %769 = vmatprep.subr.mxu0 0.0
        %770 = vmatpush1.msra.mxu0 0.0
        %771 = vmatprep.subr.mxu0 0.0
        %772 = vmatpush1.msra.mxu0 0.0
        %773 = vmatprep.subr.mxu0 0.0
        %774 = vmatpush1.msra.mxu0 0.0
        %775 = vmatprep.subr.mxu0 0.0
        %776 = vmatpush1.msra.mxu0 0.0
        %777 = vmatprep.subr.mxu0 0.0
        %778 = vmatpush1.msra.mxu0 0.0
        %779 = vmatprep.subr.mxu0 0.0
        %780 = vmatpush1.msra.mxu0 0.0
        %781 = vmatprep.subr.mxu0 0.0
        %782 = vmatpush1.msra.mxu0 0.0
        %783 = vmatprep.subr.mxu0 0.0
        %784 = vmatpush1.msra.mxu0 0.0
        %785 = vmatprep.subr.mxu0 0.0
        %786 = vmatpush1.msra.mxu0 0.0
        %787 = vmatprep.subr.mxu0 0.0
        %788 = vmatpush1.msra.mxu0 0.0
        %789 = vmatprep.subr.mxu0 0.0
        %790 = vmatpush1.msra.mxu0 0.0
        %791 = vmatprep.subr.mxu0 0.0
        %792 = vmatpush1.msra.mxu0 0.0
        %793 = vmatprep.subr.mxu0 0.0
        %794 = vmatpush1.msra.mxu0 0.0
        %795 = vmatprep.subr.mxu0 0.0
        %796 = vmatpush1.msra.mxu0 0.0
        %797 = vmatprep.subr.mxu0 0.0
        %798 = vmatpush1.msra.mxu0 0.0
        %799 = vmatprep.subr.mxu0 0.0
        %800 = vmatpush1.msra.mxu0 0.0
        %801 = vmatprep.subr.mxu0 0.0
        %802 = vmatpush1.msra.mxu0 0.0
        %803 = vmatprep.subr.mxu0 0.0
        %804 = vmatpush1.msra.mxu0 0.0
        %805 = vmatprep.subr.mxu0 0.0
        %806 = vmatpush1.msra.mxu0 0.0
        %807 = vmatprep.subr.mxu0 0.0
        %808 = vmatpush1.msra.mxu0 0.0
        %809 = vmatprep.subr.mxu0 0.0
        %810 = vmatpush1.msra.mxu0 0.0
        %811 = vmatprep.mubr.f32.mxu0 0.0
        %812 = vmatmul.mubr.f32.gmra.mrb[0].mxu0 %v745
        %v813 = vpop.f32.mrb[0].mxu0
        %v814 = vadd.f32 0.0, %v813
        %v815 = vpop.f32.mrb[0].mxu0
        %816 = vdwg.mxu0
        %v817 = vadd.f32 %v614, %v814
        %v818 = vld [vmem:[#allocation13] sm:$0x1]
        %v820 = vlaneseq
        %v821 = vshrl.u32 %v820, 7
        %v822 = vsub.s32 0, %v821
        %v823 = vrot.slane %v818, %v822
        %v825 = vadd.f32 %v817, %v823
        %v826 = vsel %vm615, %v825, 0.0
        %827 = vadd.xlane.f32.xlu0 %v826
        %v828 = vpop.xlane.xlu0 %827
        %v829 = vmul.f32 %v828, %v619
        %v830 = vsub.f32 %v825, %v829
        %v831 = vmul.f32 %v830, %v830
        %v832 = vsel %vm615, %v831, 0.0
        %833 = vadd.xlane.f32.xlu0 %v832
        %v834 = vpop.xlane.xlu0 %833
        %v835 = vmul.f32 %v834, %v619
        %v836 = vadd.f32 %v835, 1e-05
        %v837 = vrsqrt.pop %v836
        %v838 = vmul.f32 %v830, %v837
        %v839 = vld [vmem:[#allocation14] sm:$0x1]
        %v841 = vlaneseq
        %v842 = vshrl.u32 %v841, 7
        %v843 = vsub.s32 0, %v842
        %v844 = vrot.slane %v839, %v843
        %v846 = vmul.f32 %v838, %v844
        %v847 = vld [vmem:[#allocation16] sm:$0x1]
        %v849 = vlaneseq
        %v850 = vshrl.u32 %v849, 7
        %v851 = vsub.s32 0, %v850
        %v852 = vrot.slane %v847, %v851
        %v854 = vadd.f32 %v846, %v852
        %v855 = vld [vmem:[#allocation17] sm:$0xff]
        %v856 = vld [vmem:[#allocation17 + $0x8] sm:$0xff]
        %857 = vxpose.xlu0.b32.start [1/16] %v854, 128
        %858 = vxpose.xlu0.b32.cont [2/16] 0.0, 128
        %859 = vxpose.xlu0.b32.cont [3/16] 0.0, 128
        %860 = vxpose.xlu0.b32.cont [4/16] 0.0, 128
        %861 = vxpose.xlu0.b32.cont [5/16] 0.0, 128
        %862 = vxpose.xlu0.b32.cont [6/16] 0.0, 128
        %863 = vxpose.xlu0.b32.cont [7/16] 0.0, 128
        %864 = vxpose.xlu0.b32.cont [8/16] 0.0, 128
        %865 = vxpose.xlu0.b32.cont [9/16] 0.0, 128
        %866 = vxpose.xlu0.b32.cont [10/16] 0.0, 128
        %867 = vxpose.xlu0.b32.cont [11/16] 0.0, 128
        %868 = vxpose.xlu0.b32.cont [12/16] 0.0, 128
        %869 = vxpose.xlu0.b32.cont [13/16] 0.0, 128
        %870 = vxpose.xlu0.b32.cont [14/16] 0.0, 128
        %871 = vxpose.xlu0.b32.cont [15/16] 0.0, 128
        %872 = vxpose.xlu0.b32.end [16/16] 0.0, 128
        %v873 = vpop.trf.xlu0
        %v874 = vpop.trf.xlu0
        %v875 = vpop.trf.xlu0
        %v876 = vpop.trf.xlu0
        %v877 = vpop.trf.xlu0
        %v878 = vpop.trf.xlu0
        %v879 = vpop.trf.xlu0
        %v880 = vpop.trf.xlu0
        %v881 = vpop.trf.xlu0
        %v882 = vpop.trf.xlu0
        %v883 = vpop.trf.xlu0
        %v884 = vpop.trf.xlu0
        %v885 = vpop.trf.xlu0
        %v886 = vpop.trf.xlu0
        %v887 = vpop.trf.xlu0
        %v888 = vpop.trf.xlu0
        %vm889 = vcmask 64512
        %v891 = vsel %vm889, %v873, 0
        %v894 = vsel %vm889, %v874, 0
        %v897 = vsel %vm889, %v875, 0
        %v900 = vsel %vm889, %v876, 0
        %v903 = vsel %vm889, %v855, 0
        %v906 = vsel %vm889, %v856, 0
        %908 = vmatprep.subr.mxu0 0.0
        %909 = vmatpush1.xpose.msra.mxu0 %v903
        %910 = vmatprep.subr.mxu0 0.0
        %911 = vmatpush1.xpose.msra.mxu0 %v906
        %912 = vmatprep.subr.mxu0 0.0
        %913 = vmatpush1.xpose.msra.mxu0 0.0
        %914 = vmatprep.subr.mxu0 0.0
        %915 = vmatpush1.xpose.msra.mxu0 0.0
        %916 = vmatprep.subr.mxu0 0.0
        %917 = vmatpush1.xpose.msra.mxu0 0.0
        %918 = vmatprep.subr.mxu0 0.0
        %919 = vmatpush1.xpose.msra.mxu0 0.0
        %920 = vmatprep.subr.mxu0 0.0
        %921 = vmatpush1.xpose.msra.mxu0 0.0
        %922 = vmatprep.subr.mxu0 0.0
        %923 = vmatpush1.xpose.msra.mxu0 0.0
        %924 = vmatprep.subr.mxu0 0.0
        %925 = vmatpush1.xpose.msra.mxu0 0.0
        %926 = vmatprep.subr.mxu0 0.0
        %927 = vmatpush1.xpose.msra.mxu0 0.0
        %928 = vmatprep.subr.mxu0 0.0
        %929 = vmatpush1.xpose.msra.mxu0 0.0
        %930 = vmatprep.subr.mxu0 0.0
        %931 = vmatpush1.xpose.msra.mxu0 0.0
        %932 = vmatprep.subr.mxu0 0.0
        %933 = vmatpush1.xpose.msra.mxu0 0.0
        %934 = vmatprep.subr.mxu0 0.0
        %935 = vmatpush1.xpose.msra.mxu0 0.0
        %936 = vmatprep.subr.mxu0 0.0
        %937 = vmatpush1.xpose.msra.mxu0 0.0
        %938 = vmatprep.subr.mxu0 0.0
        %939 = vmatpush1.xpose.msra.mxu0 0.0
        %940 = vmatprep.subr.mxu0 0.0
        %941 = vmatpush1.xpose.msra.mxu0 0.0
        %942 = vmatprep.subr.mxu0 0.0
        %943 = vmatpush1.xpose.msra.mxu0 0.0
        %944 = vmatprep.subr.mxu0 0.0
        %945 = vmatpush1.xpose.msra.mxu0 0.0
        %946 = vmatprep.subr.mxu0 0.0
        %947 = vmatpush1.xpose.msra.mxu0 0.0
        %948 = vmatprep.subr.mxu0 0.0
        %949 = vmatpush1.xpose.msra.mxu0 0.0
        %950 = vmatprep.subr.mxu0 0.0
        %951 = vmatpush1.xpose.msra.mxu0 0.0
        %952 = vmatprep.subr.mxu0 0.0
        %953 = vmatpush1.xpose.msra.mxu0 0.0
        %954 = vmatprep.subr.mxu0 0.0
        %955 = vmatpush1.xpose.msra.mxu0 0.0
        %956 = vmatprep.subr.mxu0 0.0
        %957 = vmatpush1.xpose.msra.mxu0 0.0
        %958 = vmatprep.subr.mxu0 0.0
        %959 = vmatpush1.xpose.msra.mxu0 0.0
        %960 = vmatprep.subr.mxu0 0.0
        %961 = vmatpush1.xpose.msra.mxu0 0.0
        %962 = vmatprep.subr.mxu0 0.0
        %963 = vmatpush1.xpose.msra.mxu0 0.0
        %964 = vmatprep.subr.mxu0 0.0
        %965 = vmatpush1.xpose.msra.mxu0 0.0
        %966 = vmatprep.subr.mxu0 0.0
        %967 = vmatpush1.xpose.msra.mxu0 0.0
        %968 = vmatprep.subr.mxu0 0.0
        %969 = vmatpush1.xpose.msra.mxu0 0.0
        %970 = vmatprep.subr.mxu0 0.0
        %971 = vmatpush1.xpose.msra.mxu0 0.0
        %972 = vmatprep.mubr.f32.mxu0 0.0
        %973 = vmatmul.mubr.f32.gmra.mrb[0].mxu0 %v891
        %v974 = vpop.f32.mrb[0].mxu0
        %v975 = vadd.f32 0.0, %v974
        %v976 = vpop.f32.mrb[0].mxu0
        %977 = vmatprep.mubr.f32.mxu0 0.0
        %978 = vmatmul.mubr.f32.gmra.mrb[0].mxu0 %v894
        %v979 = vpop.f32.mrb[0].mxu0
        %v980 = vadd.f32 0.0, %v979
        %v981 = vpop.f32.mrb[0].mxu0
        %982 = vmatprep.mubr.f32.mxu0 0.0
        %983 = vmatmul.mubr.f32.gmra.mrb[0].mxu0 %v897
        %v984 = vpop.f32.mrb[0].mxu0
        %v985 = vadd.f32 0.0, %v984
        %v986 = vpop.f32.mrb[0].mxu0
        %987 = vmatprep.mubr.f32.mxu0 0.0
        %988 = vmatmul.mubr.f32.gmra.mrb[0].mxu0 %v900
        %v989 = vpop.f32.mrb[0].mxu0
        %v990 = vadd.f32 0.0, %v989
        %v991 = vpop.f32.mrb[0].mxu0
        %992 = vdwg.mxu0
        %993 = vxpose.xlu0.b32.start [1/16] %v975, 128
        %994 = vxpose.xlu0.b32.cont [2/16] %v980, 128
        %995 = vxpose.xlu0.b32.cont [3/16] %v985, 128
        %996 = vxpose.xlu0.b32.cont [4/16] %v990, 128
        %997 = vxpose.xlu0.b32.cont [5/16] 0.0, 128
        %998 = vxpose.xlu0.b32.cont [6/16] 0.0, 128
        %999 = vxpose.xlu0.b32.cont [7/16] 0.0, 128
        %1000 = vxpose.xlu0.b32.cont [8/16] 0.0, 128
        %1001 = vxpose.xlu0.b32.cont [9/16] 0.0, 128
        %1002 = vxpose.xlu0.b32.cont [10/16] 0.0, 128
        %1003 = vxpose.xlu0.b32.cont [11/16] 0.0, 128
        %1004 = vxpose.xlu0.b32.cont [12/16] 0.0, 128
        %1005 = vxpose.xlu0.b32.cont [13/16] 0.0, 128
        %1006 = vxpose.xlu0.b32.cont [14/16] 0.0, 128
        %1007 = vxpose.xlu0.b32.cont [15/16] 0.0, 128
        %1008 = vxpose.xlu0.b32.end [16/16] 0.0, 128
        %v1009 = vpop.trf.xlu0
        %v1010 = vpop.trf.xlu0
        %v1011 = vpop.trf.xlu0
        %v1012 = vpop.trf.xlu0
        %v1013 = vpop.trf.xlu0
        %v1014 = vpop.trf.xlu0
        %v1015 = vpop.trf.xlu0
        %v1016 = vpop.trf.xlu0
        %v1017 = vpop.trf.xlu0
        %v1018 = vpop.trf.xlu0
        %v1019 = vpop.trf.xlu0
        %v1020 = vpop.trf.xlu0
        %v1021 = vpop.trf.xlu0
        %v1022 = vpop.trf.xlu0
        %v1023 = vpop.trf.xlu0
        %v1024 = vpop.trf.xlu0
        %v1025 = vld [vmem:[#allocation19] sm:$0xff]
        %v1026 = vld [vmem:[#allocation19 + $0x8] sm:$0xff]
        %1028 = vset.pattern.permute.xlu0 0
        %1029 = vperm.xlu0 %1028, %v1025
        %v1030 = vpop.permute.xlu0 %1029
        %1033 = vset.pattern.permute.xlu0 0
        %1034 = vperm.xlu0 %1033, %v1026
        %v1035 = vpop.permute.xlu0 %1034
        %v1037 = vadd.f32 %v1009, %v1030
        %v1038 = vadd.f32 %v1010, %v1035
        %v1039 = vmul.f32 %v1037, 0.5
        %v1040 = vmul.f32 %v1038, 0.5
        %v1041 = vmul.f32 %v1037, 0.70710677
        %v1042 = vmul.f32 %v1038, 0.70710677
        %v1043 = verf.f32.pop %v1041
        %v1044 = verf.f32.pop %v1042
        %v1045 = vadd.f32 %v1043, 1.0
        %v1046 = vadd.f32 %v1044, 1.0
        %v1047 = vmul.f32 %v1039, %v1045
        %v1048 = vmul.f32 %v1040, %v1046
        %v1049 = vld [vmem:[#allocation20] sm:$0xff]
        %1050 = vxpose.xlu0.b32.start [1/16] %v1047, 128
        %1051 = vxpose.xlu0.b32.cont [2/16] %v1048, 128
        %1052 = vxpose.xlu0.b32.cont [3/16] 0.0, 128
        %1053 = vxpose.xlu0.b32.cont [4/16] 0.0, 128
        %1054 = vxpose.xlu0.b32.cont [5/16] 0.0, 128
        %1055 = vxpose.xlu0.b32.cont [6/16] 0.0, 128
        %1056 = vxpose.xlu0.b32.cont [7/16] 0.0, 128
        %1057 = vxpose.xlu0.b32.cont [8/16] 0.0, 128
        %1058 = vxpose.xlu0.b32.cont [9/16] 0.0, 128
        %1059 = vxpose.xlu0.b32.cont [10/16] 0.0, 128
        %1060 = vxpose.xlu0.b32.cont [11/16] 0.0, 128
        %1061 = vxpose.xlu0.b32.cont [12/16] 0.0, 128
        %1062 = vxpose.xlu0.b32.cont [13/16] 0.0, 128
        %1063 = vxpose.xlu0.b32.cont [14/16] 0.0, 128
        %1064 = vxpose.xlu0.b32.cont [15/16] 0.0, 128
        %1065 = vxpose.xlu0.b32.end [16/16] 0.0, 128
        %v1066 = vpop.trf.xlu0
        %v1067 = vpop.trf.xlu0
        %v1068 = vpop.trf.xlu0
        %v1069 = vpop.trf.xlu0
        %v1070 = vpop.trf.xlu0
        %v1071 = vpop.trf.xlu0
        %v1072 = vpop.trf.xlu0
        %v1073 = vpop.trf.xlu0
        %v1074 = vpop.trf.xlu0
        %v1075 = vpop.trf.xlu0
        %v1076 = vpop.trf.xlu0
        %v1077 = vpop.trf.xlu0
        %v1078 = vpop.trf.xlu0
        %v1079 = vpop.trf.xlu0
        %v1080 = vpop.trf.xlu0
        %v1081 = vpop.trf.xlu0
        %vm1082 = vcmask 130048
        %v1084 = vsel %vm1082, %v1066, 0
        %v1087 = vsel %vm1082, %v1067, 0
        %v1090 = vsel %vm1082, %v1068, 0
        %v1093 = vsel %vm1082, %v1069, 0
        %v1096 = vsel %vm1082, %v1049, 0
        %1098 = vmatprep.subr.mxu0 0.0
        %1099 = vmatpush1.xpose.msra.mxu0 %v1096
        %1100 = vmatprep.subr.mxu0 0.0
        %1101 = vmatpush1.xpose.msra.mxu0 0.0
        %1102 = vmatprep.subr.mxu0 0.0
        %1103 = vmatpush1.xpose.msra.mxu0 0.0
        %1104 = vmatprep.subr.mxu0 0.0
        %1105 = vmatpush1.xpose.msra.mxu0 0.0
        %1106 = vmatprep.subr.mxu0 0.0
        %1107 = vmatpush1.xpose.msra.mxu0 0.0
        %1108 = vmatprep.subr.mxu0 0.0
        %1109 = vmatpush1.xpose.msra.mxu0 0.0
        %1110 = vmatprep.subr.mxu0 0.0
        %1111 = vmatpush1.xpose.msra.mxu0 0.0
        %1112 = vmatprep.subr.mxu0 0.0
        %1113 = vmatpush1.xpose.msra.mxu0 0.0
        %1114 = vmatprep.subr.mxu0 0.0
        %1115 = vmatpush1.xpose.msra.mxu0 0.0
        %1116 = vmatprep.subr.mxu0 0.0
        %1117 = vmatpush1.xpose.msra.mxu0 0.0
        %1118 = vmatprep.subr.mxu0 0.0
        %1119 = vmatpush1.xpose.msra.mxu0 0.0
        %1120 = vmatprep.subr.mxu0 0.0
        %1121 = vmatpush1.xpose.msra.mxu0 0.0
        %1122 = vmatprep.subr.mxu0 0.0
        %1123 = vmatpush1.xpose.msra.mxu0 0.0
        %1124 = vmatprep.subr.mxu0 0.0
        %1125 = vmatpush1.xpose.msra.mxu0 0.0
        %1126 = vmatprep.subr.mxu0 0.0
        %1127 = vmatpush1.xpose.msra.mxu0 0.0
        %1128 = vmatprep.subr.mxu0 0.0
        %1129 = vmatpush1.xpose.msra.mxu0 0.0
        %1130 = vmatprep.subr.mxu0 0.0
        %1131 = vmatpush1.xpose.msra.mxu0 0.0
        %1132 = vmatprep.subr.mxu0 0.0
        %1133 = vmatpush1.xpose.msra.mxu0 0.0
        %1134 = vmatprep.subr.mxu0 0.0
        %1135 = vmatpush1.xpose.msra.mxu0 0.0
        %1136 = vmatprep.subr.mxu0 0.0
        %1137 = vmatpush1.xpose.msra.mxu0 0.0
        %1138 = vmatprep.subr.mxu0 0.0
        %1139 = vmatpush1.xpose.msra.mxu0 0.0
        %1140 = vmatprep.subr.mxu0 0.0
        %1141 = vmatpush1.xpose.msra.mxu0 0.0
        %1142 = vmatprep.subr.mxu0 0.0
        %1143 = vmatpush1.xpose.msra.mxu0 0.0
        %1144 = vmatprep.subr.mxu0 0.0
        %1145 = vmatpush1.xpose.msra.mxu0 0.0
        %1146 = vmatprep.subr.mxu0 0.0
        %1147 = vmatpush1.xpose.msra.mxu0 0.0
        %1148 = vmatprep.subr.mxu0 0.0
        %1149 = vmatpush1.xpose.msra.mxu0 0.0
        %1150 = vmatprep.subr.mxu0 0.0
        %1151 = vmatpush1.xpose.msra.mxu0 0.0
        %1152 = vmatprep.subr.mxu0 0.0
        %1153 = vmatpush1.xpose.msra.mxu0 0.0
        %1154 = vmatprep.subr.mxu0 0.0
        %1155 = vmatpush1.xpose.msra.mxu0 0.0
        %1156 = vmatprep.subr.mxu0 0.0
        %1157 = vmatpush1.xpose.msra.mxu0 0.0
        %1158 = vmatprep.subr.mxu0 0.0
        %1159 = vmatpush1.xpose.msra.mxu0 0.0
        %1160 = vmatprep.subr.mxu0 0.0
        %1161 = vmatpush1.xpose.msra.mxu0 0.0
        %1162 = vmatprep.mubr.f32.mxu0 0.0
        %1163 = vmatmul.mubr.f32.gmra.mrb[0].mxu0 %v1084
        %v1164 = vpop.f32.mrb[0].mxu0
        %v1165 = vadd.f32 0.0, %v1164
        %v1166 = vpop.f32.mrb[0].mxu0
        %1167 = vmatprep.mubr.f32.mxu0 0.0
        %1168 = vmatmul.mubr.f32.gmra.mrb[0].mxu0 %v1087
        %v1169 = vpop.f32.mrb[0].mxu0
        %v1170 = vadd.f32 0.0, %v1169
        %v1171 = vpop.f32.mrb[0].mxu0
        %1172 = vmatprep.mubr.f32.mxu0 0.0
        %1173 = vmatmul.mubr.f32.gmra.mrb[0].mxu0 %v1090
        %v1174 = vpop.f32.mrb[0].mxu0
        %v1175 = vadd.f32 0.0, %v1174
        %v1176 = vpop.f32.mrb[0].mxu0
        %1177 = vmatprep.mubr.f32.mxu0 0.0
        %1178 = vmatmul.mubr.f32.gmra.mrb[0].mxu0 %v1093
        %v1179 = vpop.f32.mrb[0].mxu0
        %v1180 = vadd.f32 0.0, %v1179
        %v1181 = vpop.f32.mrb[0].mxu0
        %1182 = vdwg.mxu0
        %1183 = vxpose.xlu0.b32.start [1/16] %v1165, 128
        %1184 = vxpose.xlu0.b32.cont [2/16] %v1170, 128
        %1185 = vxpose.xlu0.b32.cont [3/16] %v1175, 128
        %1186 = vxpose.xlu0.b32.cont [4/16] %v1180, 128
        %1187 = vxpose.xlu0.b32.cont [5/16] 0.0, 128
        %1188 = vxpose.xlu0.b32.cont [6/16] 0.0, 128
        %1189 = vxpose.xlu0.b32.cont [7/16] 0.0, 128
        %1190 = vxpose.xlu0.b32.cont [8/16] 0.0, 128
        %1191 = vxpose.xlu0.b32.cont [9/16] 0.0, 128
        %1192 = vxpose.xlu0.b32.cont [10/16] 0.0, 128
        %1193 = vxpose.xlu0.b32.cont [11/16] 0.0, 128
        %1194 = vxpose.xlu0.b32.cont [12/16] 0.0, 128
        %1195 = vxpose.xlu0.b32.cont [13/16] 0.0, 128
        %1196 = vxpose.xlu0.b32.cont [14/16] 0.0, 128
        %1197 = vxpose.xlu0.b32.cont [15/16] 0.0, 128
        %1198 = vxpose.xlu0.b32.end [16/16] 0.0, 128
        %v1199 = vpop.trf.xlu0
        %v1200 = vpop.trf.xlu0
        %v1201 = vpop.trf.xlu0
        %v1202 = vpop.trf.xlu0
        %v1203 = vpop.trf.xlu0
        %v1204 = vpop.trf.xlu0
        %v1205 = vpop.trf.xlu0
        %v1206 = vpop.trf.xlu0
        %v1207 = vpop.trf.xlu0
        %v1208 = vpop.trf.xlu0
        %v1209 = vpop.trf.xlu0
        %v1210 = vpop.trf.xlu0
        %v1211 = vpop.trf.xlu0
        %v1212 = vpop.trf.xlu0
        %v1213 = vpop.trf.xlu0
        %v1214 = vpop.trf.xlu0
        %v1215 = vld [vmem:[#allocation22] sm:$0xff]
        %1217 = vset.pattern.permute.xlu0 0
        %1218 = vperm.xlu0 %1217, %v1215
        %v1219 = vpop.permute.xlu0 %1218
        %v1221 = vadd.f32 %v1199, %v1219
        %v1222 = vadd.f32 %v825, %v1221
        %1223 = vst.msk [vmem:[%s613] sm:$0xff] %vm615, %v1222
        %s1224 = sand.u32 %s322, 1
        %s1225 = scalar_lea.sflag [#allocation4], %s1224
        %s1226 = sand.u32 %s322, 1
        %s1227 = smul.addr %s1226, 8
        %s1228 = scalar_lea.vmem [#allocation23], %s1227
        // Predicated region
        $region125: #{mixer_block_forward.1} parent=71 // pred_check
          %p1229 = pneg %p332
        $region126: #{mixer_block_forward.1} parent=71 // pred_check_branch
          %1231 = sbr.rel (%p1229) target = $region128
        $region127: #{mixer_block_forward.1} parent=71 // pred_region
          %s1233 = ssub.s32 128, 128
          %1234 = vsyncadd %s1225, %s1233
          %s1235 = smul.addr %s36, 128
          %s1236 = scalar_lea.hbm %s13, %s1235
          %s1238 = sshll.u32 %s1228, 4
          %s1239 = int_to_ptr.vmem [resolvable:$true] %s1238
          %1241 = dma.vmem_to_hbm [thread:$0]  %s1239, 128, %s1236, %s1225
        $region128: #{mixer_block_forward.1} parent=71 // pred_fallthru
          _
      $region72: #{mixer_block_forward.1} parent=5 // pred_fallthru
        _
      %p1242 = scmp.le.s32.totalorder 2, %s31
      // Predicated region
      $region129: #{mixer_block_forward.1} parent=5 // pred_check
        %p1243 = pneg %p1242
      $region130: #{mixer_block_forward.1} parent=5 // pred_check_branch
        %1245 = sbr.rel (%p1243) target = $region132
      $region131: #{mixer_block_forward.1} parent=5 // pred_region
        %s1246 = ssub.s32 %s31, 2
        // Predicated region
        $region133: #{mixer_block_forward.1} parent=131 // pred_check
          %p1247 = pneg %p338
        $region134: #{mixer_block_forward.1} parent=131 // pred_check_branch
          %1249 = sbr.rel (%p1247) target = $region136
        $region135: #{mixer_block_forward.1} parent=131 // pred_region
          %s1250 = sand.u32 %s323, 1
          %s1251 = scalar_lea.sflag [#allocation4], %s1250
          %s1252 = sand.u32 %s323, 1
          %s1253 = smul.addr %s1252, 8
          %s1254 = scalar_lea.vmem [#allocation23], %s1253
          %1255 = dma.done %s1251, 128
        $region136: #{mixer_block_forward.1} parent=131 // pred_fallthru
          _
      $region132: #{mixer_block_forward.1} parent=5 // pred_fallthru
        _
    $region6: #{mixer_block_forward.1} parent=1 // loop_footer
      %s35 = sadd.s32 1, %s31
    $region7: #{mixer_block_forward.1} parent=1 // loop_footer_branch
      %30 = sbr.rel target = $region3
    $region8: #{mixer_block_forward.1} parent=1 // loop_exit
      _
    %1256 = vsyncpa [#allocation3], 1
    %s1257 = scalar_lea.sflag [#allocation3], 1
    %1258 = vsyncpa %s1257, 1
    %1259 = vsyncpa [#allocation6], 1
    %1260 = vsyncpa [#allocation9], 1
    %1261 = vsyncpa [#allocation12], 1
    %1262 = vsyncpa [#allocation15], 1
    %1263 = vsyncpa [#allocation18], 1
    %1264 = vsyncpa [#allocation21], 1
    %1265 = vsyncpa [#allocation4], 1
    %s1266 = scalar_lea.sflag [#allocation4], 1
    %1267 = vsyncpa %s1266, 1

</llo_original>
